<compile_context>
chip_gen: v7x
topology: tpu7x:2x2x1
jax: 0.10.0
libtpu: 0.0.40
codegen_flags: <defaults>
</compile_context>

<pallas_src>
import functools

import jax
import jax.numpy as jnp
import numpy as np
from jax.experimental import pallas as pl
from jax.experimental.pallas import tpu as pltpu


def _elu(x):
    # PyTorch nn.ELU(alpha=1.0): x if x > 0 else exp(x) - 1
    return jnp.where(x > 0, x, jnp.exp(jnp.minimum(x, 0.0)) - 1.0)


# --------------------------------------------------------------------------
# Fused CPM kernel (one grid step = B images)
# --------------------------------------------------------------------------
def _cpm_kernel(x_ref, wak_ref, bat_ref, dwt_ref, pwk_ref, wcb_ref, bct_ref,
                o_ref, t_buf, *, B, H, W, C):
    """Shapes (f = W*C lanes, fi = W*Cin lanes, M = B*H rows):
      x_ref   : (M, fi)      image rows in (y, x*Cin + ci) layout, B images
      wak_ref : (fi, f)      bf16 kron(I_W, align_w)
      bat_ref : (1, f)       f32 tile(align_b, W)
      dwt_ref : (27, f)      f32 depthwise taps, row = s*9 + ky*3 + kx
      pwk_ref : (3, f, f)    bf16 kron(I_W, trunk pointwise w), one per stage
      wcb_ref : (3*f, f)     bf16 row-stacked banded final-conv matrices
      bct_ref : (1, f)       f32 tile(conv_b, W)
      o_ref   : (M, f)
      t_buf   : VMEM (B, 8+H+1, f) f32; interior rows [8, 8+H) (tile aligned),
                zero halo rows 7 and 8+H.
    """
    f32 = jnp.float32
    bf16 = jnp.bfloat16
    WC = W * C
    M = B * H
    TOP = 8                       # sublane-aligned interior offset

    # Hoisted lane masks for the +/-1-pixel (= +/-C lane) column shifts.
    lane = jax.lax.broadcasted_iota(jnp.int32, (M, WC), 1)
    valid_left = lane >= C            # tap reads pixel x-1 (invalid at x == 0)
    valid_right = lane < WC - C       # tap reads pixel x+1 (invalid at x == W-1)

    # ---- align: 1x1 conv + bias + ReLU (one lane-dense bf16 MXU dot) --------
    a = jnp.dot(x_ref[...].astype(bf16), wak_ref[...],
                preferred_element_type=f32)
    a = jnp.maximum(a + bat_ref[...], 0.0)               # (M, WC) f32, in vregs

    # ---- t_buf init: zero ONLY the two halo rows, then store the interior ---
    t_buf[:, TOP - 1:TOP, :] = jnp.zeros((B, 1, WC), f32)
    t_buf[:, TOP + H:TOP + H + 1, :] = jnp.zeros((B, 1, WC), f32)
    t_buf[:, TOP:TOP + H, :] = a.reshape(B, H, WC)        # tile-aligned store

    def row_taps():
        # (M, WC) views of the 3 vertical taps (y-1, y, y+1) for all B images.
        return [t_buf[:, TOP - 1 + ky:TOP - 1 + ky + H, :].reshape(M, WC)
                for ky in range(3)]

    # ---- trunk: 3 x (depthwise 3x3 + ELU, pointwise 1x1 + ELU) --------------
    for s in range(3):
        rows = row_taps()                                  # VPU path, f32
        pre = []
        for kx in range(3):
            acc = rows[0] * dwt_ref[s * 9 + kx:s * 9 + kx + 1, :]
            acc = acc + rows[1] * dwt_ref[s * 9 + 3 + kx:s * 9 + 3 + kx + 1, :]
            acc = acc + rows[2] * dwt_ref[s * 9 + 6 + kx:s * 9 + 6 + kx + 1, :]
            pre.append(acc)
        d = (pre[1]
             + jnp.where(valid_left, pltpu.roll(pre[0], C, axis=1), 0.0)
             + jnp.where(valid_right, pltpu.roll(pre[2], WC - C, axis=1), 0.0))
        d = _elu(d)
        t = _elu(jnp.dot(d.astype(bf16), pwk_ref[s],
                         preferred_element_type=f32))
        if s == 2:
            t = t + a          # fused residual: out-conv input = align + trunk
        t_buf[:, TOP:TOP + H, :] = t.reshape(B, H, WC)

    # ---- out: 3x3 conv + bias + ReLU, fused into ONE MXU dot (K = 3*WC) -----
    rows = row_taps()
    z = jnp.concatenate(rows, axis=1).astype(bf16)         # (M, 3*WC)
    y = jnp.dot(z, wcb_ref[...], preferred_element_type=f32)
    y = jnp.maximum(y + bct_ref[...], 0.0)
    o_ref[...] = y.astype(o_ref.dtype)


# --------------------------------------------------------------------------
# Weight preprocessing (done once at trace time, tiny)
# --------------------------------------------------------------------------
def _kron_eye(w, W):
    """Per-pixel (Ci,Co) 1x1 conv as one (W*Ci, W*Co) block-diagonal matmul."""
    return jnp.kron(jnp.eye(W, dtype=w.dtype), w)


def _banded_3x3(w_ky, W):
    """Fold the 3 column taps of one 3x3-conv row into a banded matrix.

    w_ky: (3, Ci, Co), indexed by dx so the tap reads source column x + dx - 1.
    Returns M with M[x'*Ci+ci, x*Co+co] = w_ky[x'-x+1, ci, co] for |x'-x|<=1.
    """
    mats = [jnp.kron(jnp.eye(W, W, k=1 - dx, dtype=w_ky.dtype), w_ky[dx])
            for dx in range(3)]
    return mats[0] + mats[1] + mats[2]


def _pick_image_tile(N, H, target_rows=256):
    """Images per grid step: make M = B*H large enough to fill the MXU.
    If the grid would collapse to a single step, only fall back to a longer
    grid (>= 2 steps, useful for v7x's two TensorCores) when that still keeps
    M >= 128 rows."""
    best = 1
    for b in range(1, N + 1):
        if N % b == 0 and b * H <= target_rows:
            best = b
    if N // best < 2:
        for b in range(best - 1, 0, -1):
            if N % b == 0 and N // b >= 2 and b * H >= 128:
                return b
    return best


# --------------------------------------------------------------------------
# Parameters (deterministic, synthetic)
# --------------------------------------------------------------------------
def make_cpm_params(key, in_channels, out_channels, dtype=jnp.float32):
    keys = list(jax.random.split(key, 16))
    it = iter(keys)

    def rnd(shape, scale):
        return (scale * jax.random.normal(next(it), shape)).astype(dtype)

    params = {
        "align_w": rnd((in_channels, out_channels), 0.3),      # torch (O,I,1,1) -> (I,O)
        "align_b": rnd((out_channels,), 0.1),
        "trunk": [],
        "conv_w": rnd((3, 3, out_channels, out_channels), 0.15),  # torch (O,I,3,3) -> (ky,kx,I,O)
        "conv_b": rnd((out_channels,), 0.1),
    }
    for _ in range(3):
        dw = rnd((3, 3, out_channels), 0.2)                    # torch (C,1,3,3) -> (ky,kx,C)
        pw = rnd((out_channels, out_channels), 0.2)            # torch (O,I,1,1) -> (I,O)
        params["trunk"].append((dw, pw))
    return params


# --------------------------------------------------------------------------
# Cpm forward (NCHW in / NCHW out, like PyTorch)
# --------------------------------------------------------------------------
def cpm_forward(x_nchw, params, *, images_per_step=None):
    N, Cin, H, W = x_nchw.shape
    C = params["align_w"].shape[1]
    WC = W * C
    dtype = x_nchw.dtype
    f32 = jnp.float32
    bf16 = jnp.bfloat16

    B = images_per_step if images_per_step is not None else _pick_image_tile(N, H)
    assert N % B == 0

    # Activations in (N*H, W*channels) lane-dense layout.
    x_rows = jnp.transpose(x_nchw, (0, 2, 3, 1)).reshape(N * H, W * Cin)

    # Fold the spatial structure of the convs into the (tiny) weights.
    # MXU operands pre-cast to bf16 once here (f32 accumulation in the kernel).
    wak = _kron_eye(params["align_w"], W).astype(bf16)                   # (W*Cin, WC)
    bat = jnp.tile(params["align_b"], W).reshape(1, WC).astype(f32)
    dwt = jnp.stack([jnp.tile(dw, (1, 1, W)).reshape(9, WC)
                     for dw, _ in params["trunk"]]).reshape(27, WC).astype(f32)
    pwk = jnp.stack([_kron_eye(pw, W)
                     for _, pw in params["trunk"]]).astype(bf16)         # (3, WC, WC)
    wcb = jnp.concatenate([_banded_3x3(params["conv_w"][ky], W)
                           for ky in range(3)], axis=0).astype(bf16)     # (3*WC, WC)
    bct = jnp.tile(params["conv_b"], W).reshape(1, WC).astype(f32)

    HP = 8 + H + 1   # interior at rows [8, 8+H); zero halo rows 7 and 8+H

    out_rows = pl.pallas_call(
        functools.partial(_cpm_kernel, B=B, H=H, W=W, C=C),
        out_shape=jax.ShapeDtypeStruct((N * H, WC), dtype),
        grid=(N // B,),
        in_specs=[
            pl.BlockSpec((B * H, W * Cin), lambda n: (n, 0)),
            pl.BlockSpec((W * Cin, WC), lambda n: (0, 0)),
            pl.BlockSpec((1, WC), lambda n: (0, 0)),
            pl.BlockSpec((27, WC), lambda n: (0, 0)),
            pl.BlockSpec((3, WC, WC), lambda n: (0, 0, 0)),
            pl.BlockSpec((3 * WC, WC), lambda n: (0, 0)),
            pl.BlockSpec((1, WC), lambda n: (0, 0)),
        ],
        out_specs=pl.BlockSpec((B * H, WC), lambda n: (n, 0)),
        scratch_shapes=[pltpu.VMEM((B, HP, WC), jnp.float32)],
        compiler_params=pltpu.CompilerParams(
            dimension_semantics=("parallel",),
            vmem_limit_bytes=32 * 1024 * 1024),
    )(x_rows, wak, bat, dwt, pwk, wcb, bct)

    y = out_rows.reshape(N, H, W, C)
    return jnp.transpose(y, (0, 3, 1, 2))                     # NHWC -> NCHW


# --------------------------------------------------------------------------
# Pure-JAX reference (for correctness check)
# --------------------------------------------------------------------------
def cpm_reference(x_nchw, params):
    dn = ("NHWC", "HWIO", "NHWC")
    x = jnp.transpose(x_nchw, (0, 2, 3, 1))

    def pw(v, w, b, act):
        y = jax.lax.conv_general_dilated(v, w.reshape(1, 1, *w.shape),
                                         (1, 1), "VALID",
                                         dimension_numbers=dn) + b
        return jnp.maximum(y, 0.0) if act == "relu" else _elu(y)

    def dwc(v, w):
        C = v.shape[-1]
        y = jax.lax.conv_general_dilated(v, w.reshape(3, 3, 1, C), (1, 1),
                                         ((1, 1), (1, 1)),
                                         dimension_numbers=dn,
                                         feature_group_count=C)
        return _elu(y)

    cout = params["align_w"].shape[1]
    a = pw(x, params["align_w"], params["align_b"], "relu")
    t = a
    for dw, pwt in params["trunk"]:
        t = dwc(t, dw)
        t = pw(t, pwt, jnp.zeros((cout,), t.dtype), "elu")
    y = jax.lax.conv_general_dilated(a + t, params["conv_w"], (1, 1),
                                     ((1, 1), (1, 1)),
                                     dimension_numbers=dn) + params["conv_b"]
    y = jnp.maximum(y, 0.0)
    return jnp.transpose(y, (0, 3, 1, 2))


if __name__ == "__main__":
    key = jax.random.PRNGKey(0)
    kx_, kp = jax.random.split(key)

    N, Cin, H, W = 2, 4, 16, 16
    Cout = 8                       # W * Cout = 128 -> fully lane-dense layout

    x = jax.random.normal(kx_, (N, Cin, H, W), jnp.float32)
    params = make_cpm_params(kp, Cin, Cout)

    y = jax.jit(cpm_forward)(x, params)
    y = jax.block_until_ready(y)

    y_ref = cpm_reference(x, params)
    # bf16 MXU operands (f32 accumulation) -> compare at bf16-level tolerance.
    np.testing.assert_allclose(np.asarray(y), np.asarray(y_ref),
                               rtol=2e-2, atol=2e-2)
    print("KERNEL_OK")
</pallas_src>

<mosaic_0001>
module attributes {stable_mosaic.version = 11 : i64} {
  func.func @_cpm_kernel(%arg0: i32, %arg1: memref<32x64xf32, #tpu.memory_space<vmem>>, %arg2: memref<64x128xbf16, #tpu.memory_space<vmem>>, %arg3: memref<1x128xf32, #tpu.memory_space<vmem>>, %arg4: memref<27x128xf32, #tpu.memory_space<vmem>>, %arg5: memref<3x128x128xbf16, #tpu.memory_space<vmem>>, %arg6: memref<384x128xbf16, #tpu.memory_space<vmem>>, %arg7: memref<1x128xf32, #tpu.memory_space<vmem>>, %arg8: memref<32x128xf32, #tpu.memory_space<vmem>>, %arg9: memref<2x25x128xf32, #tpu.memory_space<vmem>>) attributes {dimension_semantics = [#tpu.dimension_semantics<parallel>], iteration_bounds = array<i64: 1>, scalar_prefetch = 0 : i64, scratch_operands = 1 : i64, tpu.core_type = #tpu.core_type<tc>, window_params = [{transform_indices = @transform_0, window_bounds = array<i64: 32, 64>}, {pipeline_mode = #tpu.pipeline_mode<synchronous>, transform_indices = @transform_1, window_bounds = array<i64: 64, 128>}, {pipeline_mode = #tpu.pipeline_mode<synchronous>, transform_indices = @transform_2, window_bounds = array<i64: 1, 128>}, {pipeline_mode = #tpu.pipeline_mode<synchronous>, transform_indices = @transform_3, window_bounds = array<i64: 27, 128>}, {pipeline_mode = #tpu.pipeline_mode<synchronous>, transform_indices = @transform_4, window_bounds = array<i64: 3, 128, 128>}, {pipeline_mode = #tpu.pipeline_mode<synchronous>, transform_indices = @transform_5, window_bounds = array<i64: 384, 128>}, {pipeline_mode = #tpu.pipeline_mode<synchronous>, transform_indices = @transform_6, window_bounds = array<i64: 1, 128>}, {transform_indices = @transform_7, window_bounds = array<i64: 32, 128>}]} {
    %0 = tpu.iota {dimensions = array<i32: 1>} : vector<32x128xi32>
    %c8_i32 = arith.constant 8 : i32
    %1 = vector.broadcast %c8_i32 : i32 to vector<32x128xi32>
    %2 = arith.cmpi sge, %0, %1 : vector<32x128xi32>
    %c120_i32 = arith.constant 120 : i32
    %3 = vector.broadcast %c120_i32 : i32 to vector<32x128xi32>
    %4 = arith.cmpi slt, %0, %3 : vector<32x128xi32>
    %c0 = arith.constant 0 : index
    %c0_0 = arith.constant 0 : index
    %5 = vector.load %arg1[%c0, %c0_0] : memref<32x64xf32, #tpu.memory_space<vmem>>, vector<32x64xf32>
    %6 = arith.truncf %5 : vector<32x64xf32> to vector<32x64xbf16>
    %c0_1 = arith.constant 0 : index
    %c0_2 = arith.constant 0 : index
    %7 = vector.load %arg2[%c0_1, %c0_2] : memref<64x128xbf16, #tpu.memory_space<vmem>>, vector<64x128xbf16>
    %cst = arith.constant dense<0.000000e+00> : vector<32x128xf32>
    %8 = tpu.matmul %6, %7, %cst {dimension_numbers = #tpu.dot_dimension_numbers<[1], [0], [0], [1], [0, 0, 1, 1], [], []>} : vector<32x64xbf16>, vector<64x128xbf16>, vector<32x128xf32> -> vector<32x128xf32>
    %c0_3 = arith.constant 0 : index
    %c0_4 = arith.constant 0 : index
    %9 = vector.load %arg3[%c0_3, %c0_4] : memref<1x128xf32, #tpu.memory_space<vmem>>, vector<1x128xf32>
    %10 = vector.broadcast %9 : vector<1x128xf32> to vector<32x128xf32>
    %11 = arith.addf %8, %10 : vector<32x128xf32>
    %cst_5 = arith.constant 0.000000e+00 : f32
    %12 = vector.broadcast %cst_5 : f32 to vector<32x128xf32>
    %13 = arith.maximumf %11, %12 : vector<32x128xf32>
    %cst_6 = arith.constant 0.000000e+00 : f32
    %14 = vector.broadcast %cst_6 : f32 to vector<2x1x128xf32>
    %c0_7 = arith.constant 0 : index
    %c7 = arith.constant 7 : index
    %c0_8 = arith.constant 0 : index
    %15 = vector.load %arg9[%c0_7, %c7, %c0_8] : memref<2x25x128xf32, #tpu.memory_space<vmem>>, vector<2x1x128xf32>
    tpu.vector_store %arg9[%c0_7, %c7, %c0_8], %14 {strides = array<i32>} : memref<2x25x128xf32, #tpu.memory_space<vmem>>, vector<2x1x128xf32>,
    %cst_9 = arith.constant 0.000000e+00 : f32
    %16 = vector.broadcast %cst_9 : f32 to vector<2x1x128xf32>
    %c0_10 = arith.constant 0 : index
    %c24 = arith.constant 24 : index
    %c0_11 = arith.constant 0 : index
    %17 = vector.load %arg9[%c0_10, %c24, %c0_11] : memref<2x25x128xf32, #tpu.memory_space<vmem>>, vector<2x1x128xf32>
    tpu.vector_store %arg9[%c0_10, %c24, %c0_11], %16 {strides = array<i32>} : memref<2x25x128xf32, #tpu.memory_space<vmem>>, vector<2x1x128xf32>,
    %18 = vector.shape_cast %13 : vector<32x128xf32> to vector<2x16x128xf32>
    %c0_12 = arith.constant 0 : index
    %c8 = arith.constant 8 : index
    %c0_13 = arith.constant 0 : index
    %19 = vector.load %arg9[%c0_12, %c8, %c0_13] : memref<2x25x128xf32, #tpu.memory_space<vmem>>, vector<2x16x128xf32>
    tpu.vector_store %arg9[%c0_12, %c8, %c0_13], %18 {strides = array<i32>} : memref<2x25x128xf32, #tpu.memory_space<vmem>>, vector<2x16x128xf32>,
    %c0_14 = arith.constant 0 : index
    %c7_15 = arith.constant 7 : index
    %c0_16 = arith.constant 0 : index
    %20 = vector.load %arg9[%c0_14, %c7_15, %c0_16] : memref<2x25x128xf32, #tpu.memory_space<vmem>>, vector<2x16x128xf32>
    %21 = vector.shape_cast %20 : vector<2x16x128xf32> to vector<32x128xf32>
    %c0_17 = arith.constant 0 : index
    %c8_18 = arith.constant 8 : index
    %c0_19 = arith.constant 0 : index
    %22 = vector.load %arg9[%c0_17, %c8_18, %c0_19] : memref<2x25x128xf32, #tpu.memory_space<vmem>>, vector<2x16x128xf32>
    %23 = vector.shape_cast %22 : vector<2x16x128xf32> to vector<32x128xf32>
    %c0_20 = arith.constant 0 : index
    %c9 = arith.constant 9 : index
    %c0_21 = arith.constant 0 : index
    %24 = vector.load %arg9[%c0_20, %c9, %c0_21] : memref<2x25x128xf32, #tpu.memory_space<vmem>>, vector<2x16x128xf32>
    %25 = vector.shape_cast %24 : vector<2x16x128xf32> to vector<32x128xf32>
    %c0_22 = arith.constant 0 : index
    %c0_23 = arith.constant 0 : index
    %26 = vector.load %arg4[%c0_22, %c0_23] : memref<27x128xf32, #tpu.memory_space<vmem>>, vector<1x128xf32>
    %27 = vector.broadcast %26 : vector<1x128xf32> to vector<32x128xf32>
    %28 = arith.mulf %21, %27 : vector<32x128xf32>
    %c3 = arith.constant 3 : index
    %c0_24 = arith.constant 0 : index
    %29 = vector.load %arg4[%c3, %c0_24] : memref<27x128xf32, #tpu.memory_space<vmem>>, vector<1x128xf32>
    %30 = vector.broadcast %29 : vector<1x128xf32> to vector<32x128xf32>
    %31 = arith.mulf %23, %30 : vector<32x128xf32>
    %32 = arith.addf %28, %31 : vector<32x128xf32>
    %c6 = arith.constant 6 : index
    %c0_25 = arith.constant 0 : index
    %33 = vector.load %arg4[%c6, %c0_25] : memref<27x128xf32, #tpu.memory_space<vmem>>, vector<1x128xf32>
    %34 = vector.broadcast %33 : vector<1x128xf32> to vector<32x128xf32>
    %35 = arith.mulf %25, %34 : vector<32x128xf32>
    %36 = arith.addf %32, %35 : vector<32x128xf32>
    %c1 = arith.constant 1 : index
    %c0_26 = arith.constant 0 : index
    %37 = vector.load %arg4[%c1, %c0_26] : memref<27x128xf32, #tpu.memory_space<vmem>>, vector<1x128xf32>
    %38 = vector.broadcast %37 : vector<1x128xf32> to vector<32x128xf32>
    %39 = arith.mulf %21, %38 : vector<32x128xf32>
    %c4 = arith.constant 4 : index
    %c0_27 = arith.constant 0 : index
    %40 = vector.load %arg4[%c4, %c0_27] : memref<27x128xf32, #tpu.memory_space<vmem>>, vector<1x128xf32>
    %41 = vector.broadcast %40 : vector<1x128xf32> to vector<32x128xf32>
    %42 = arith.mulf %23, %41 : vector<32x128xf32>
    %43 = arith.addf %39, %42 : vector<32x128xf32>
    %c7_28 = arith.constant 7 : index
    %c0_29 = arith.constant 0 : index
    %44 = vector.load %arg4[%c7_28, %c0_29] : memref<27x128xf32, #tpu.memory_space<vmem>>, vector<1x128xf32>
    %45 = vector.broadcast %44 : vector<1x128xf32> to vector<32x128xf32>
    %46 = arith.mulf %25, %45 : vector<32x128xf32>
    %47 = arith.addf %43, %46 : vector<32x128xf32>
    %c2 = arith.constant 2 : index
    %c0_30 = arith.constant 0 : index
    %48 = vector.load %arg4[%c2, %c0_30] : memref<27x128xf32, #tpu.memory_space<vmem>>, vector<1x128xf32>
    %49 = vector.broadcast %48 : vector<1x128xf32> to vector<32x128xf32>
    %50 = arith.mulf %21, %49 : vector<32x128xf32>
    %c5 = arith.constant 5 : index
    %c0_31 = arith.constant 0 : index
    %51 = vector.load %arg4[%c5, %c0_31] : memref<27x128xf32, #tpu.memory_space<vmem>>, vector<1x128xf32>
    %52 = vector.broadcast %51 : vector<1x128xf32> to vector<32x128xf32>
    %53 = arith.mulf %23, %52 : vector<32x128xf32>
    %54 = arith.addf %50, %53 : vector<32x128xf32>
    %c8_32 = arith.constant 8 : index
    %c0_33 = arith.constant 0 : index
    %55 = vector.load %arg4[%c8_32, %c0_33] : memref<27x128xf32, #tpu.memory_space<vmem>>, vector<1x128xf32>
    %56 = vector.broadcast %55 : vector<1x128xf32> to vector<32x128xf32>
    %57 = arith.mulf %25, %56 : vector<32x128xf32>
    %58 = arith.addf %54, %57 : vector<32x128xf32>
    %c8_i32_34 = arith.constant 8 : i32
    %59 = tpu.dynamic_rotate %36 by %c8_i32_34 dim 1 : vector<32x128xf32>, i32 -> vector<32x128xf32>
    %cst_35 = arith.constant 0.000000e+00 : f32
    %60 = vector.broadcast %cst_35 : f32 to vector<32x128xf32>
    %61 = arith.select %2, %59, %60 : vector<32x128xi1>, vector<32x128xf32>
    %62 = arith.addf %47, %61 : vector<32x128xf32>
    %c120_i32_36 = arith.constant 120 : i32
    %63 = tpu.dynamic_rotate %58 by %c120_i32_36 dim 1 : vector<32x128xf32>, i32 -> vector<32x128xf32>
    %cst_37 = arith.constant 0.000000e+00 : f32
    %64 = vector.broadcast %cst_37 : f32 to vector<32x128xf32>
    %65 = arith.select %4, %63, %64 : vector<32x128xi1>, vector<32x128xf32>
    %66 = arith.addf %62, %65 : vector<32x128xf32>
    %cst_38 = arith.constant 0.000000e+00 : f32
    %67 = vector.broadcast %cst_38 : f32 to vector<32x128xf32>
    %68 = arith.cmpf ogt, %66, %67 : vector<32x128xf32>
    %cst_39 = arith.constant 0.000000e+00 : f32
    %69 = vector.broadcast %cst_39 : f32 to vector<32x128xf32>
    %70 = arith.minimumf %66, %69 : vector<32x128xf32>
    %71 = math.exp %70 : vector<32x128xf32>
    %cst_40 = arith.constant 1.000000e+00 : f32
    %72 = vector.broadcast %cst_40 : f32 to vector<32x128xf32>
    %73 = arith.subf %71, %72 : vector<32x128xf32>
    %74 = arith.select %68, %66, %73 : vector<32x128xi1>, vector<32x128xf32>
    %75 = arith.truncf %74 : vector<32x128xf32> to vector<32x128xbf16>
    %c0_41 = arith.constant 0 : index
    %c0_42 = arith.constant 0 : index
    %c0_43 = arith.constant 0 : index
    %76 = vector.load %arg5[%c0_41, %c0_42, %c0_43] : memref<3x128x128xbf16, #tpu.memory_space<vmem>>, vector<1x128x128xbf16>
    %77 = vector.shape_cast %76 : vector<1x128x128xbf16> to vector<128x128xbf16>
    %cst_44 = arith.constant dense<0.000000e+00> : vector<32x128xf32>
    %78 = tpu.matmul %75, %77, %cst_44 {dimension_numbers = #tpu.dot_dimension_numbers<[1], [0], [0], [1], [0, 0, 1, 1], [], []>} : vector<32x128xbf16>, vector<128x128xbf16>, vector<32x128xf32> -> vector<32x128xf32>
    %cst_45 = arith.constant 0.000000e+00 : f32
    %79 = vector.broadcast %cst_45 : f32 to vector<32x128xf32>
    %80 = arith.cmpf ogt, %78, %79 : vector<32x128xf32>
    %cst_46 = arith.constant 0.000000e+00 : f32
    %81 = vector.broadcast %cst_46 : f32 to vector<32x128xf32>
    %82 = arith.minimumf %78, %81 : vector<32x128xf32>
    %83 = math.exp %82 : vector<32x128xf32>
    %cst_47 = arith.constant 1.000000e+00 : f32
    %84 = vector.broadcast %cst_47 : f32 to vector<32x128xf32>
    %85 = arith.subf %83, %84 : vector<32x128xf32>
    %86 = arith.select %80, %78, %85 : vector<32x128xi1>, vector<32x128xf32>
    %87 = vector.shape_cast %86 : vector<32x128xf32> to vector<2x16x128xf32>
    %c0_48 = arith.constant 0 : index
    %c8_49 = arith.constant 8 : index
    %c0_50 = arith.constant 0 : index
    %88 = vector.load %arg9[%c0_48, %c8_49, %c0_50] : memref<2x25x128xf32, #tpu.memory_space<vmem>>, vector<2x16x128xf32>
    tpu.vector_store %arg9[%c0_48, %c8_49, %c0_50], %87 {strides = array<i32>} : memref<2x25x128xf32, #tpu.memory_space<vmem>>, vector<2x16x128xf32>,
    %c0_51 = arith.constant 0 : index
    %c7_52 = arith.constant 7 : index
    %c0_53 = arith.constant 0 : index
    %89 = vector.load %arg9[%c0_51, %c7_52, %c0_53] : memref<2x25x128xf32, #tpu.memory_space<vmem>>, vector<2x16x128xf32>
    %90 = vector.shape_cast %89 : vector<2x16x128xf32> to vector<32x128xf32>
    %c0_54 = arith.constant 0 : index
    %c8_55 = arith.constant 8 : index
    %c0_56 = arith.constant 0 : index
    %91 = vector.load %arg9[%c0_54, %c8_55, %c0_56] : memref<2x25x128xf32, #tpu.memory_space<vmem>>, vector<2x16x128xf32>
    %92 = vector.shape_cast %91 : vector<2x16x128xf32> to vector<32x128xf32>
    %c0_57 = arith.constant 0 : index
    %c9_58 = arith.constant 9 : index
    %c0_59 = arith.constant 0 : index
    %93 = vector.load %arg9[%c0_57, %c9_58, %c0_59] : memref<2x25x128xf32, #tpu.memory_space<vmem>>, vector<2x16x128xf32>
    %94 = vector.shape_cast %93 : vector<2x16x128xf32> to vector<32x128xf32>
    %c9_60 = arith.constant 9 : index
    %c0_61 = arith.constant 0 : index
    %95 = vector.load %arg4[%c9_60, %c0_61] : memref<27x128xf32, #tpu.memory_space<vmem>>, vector<1x128xf32>
    %96 = vector.broadcast %95 : vector<1x128xf32> to vector<32x128xf32>
    %97 = arith.mulf %90, %96 : vector<32x128xf32>
    %c12 = arith.constant 12 : index
    %c0_62 = arith.constant 0 : index
    %98 = vector.load %arg4[%c12, %c0_62] : memref<27x128xf32, #tpu.memory_space<vmem>>, vector<1x128xf32>
    %99 = vector.broadcast %98 : vector<1x128xf32> to vector<32x128xf32>
    %100 = arith.mulf %92, %99 : vector<32x128xf32>
    %101 = arith.addf %97, %100 : vector<32x128xf32>
    %c15 = arith.constant 15 : index
    %c0_63 = arith.constant 0 : index
    %102 = vector.load %arg4[%c15, %c0_63] : memref<27x128xf32, #tpu.memory_space<vmem>>, vector<1x128xf32>
    %103 = vector.broadcast %102 : vector<1x128xf32> to vector<32x128xf32>
    %104 = arith.mulf %94, %103 : vector<32x128xf32>
    %105 = arith.addf %101, %104 : vector<32x128xf32>
    %c10 = arith.constant 10 : index
    %c0_64 = arith.constant 0 : index
    %106 = vector.load %arg4[%c10, %c0_64] : memref<27x128xf32, #tpu.memory_space<vmem>>, vector<1x128xf32>
    %107 = vector.broadcast %106 : vector<1x128xf32> to vector<32x128xf32>
    %108 = arith.mulf %90, %107 : vector<32x128xf32>
    %c13 = arith.constant 13 : index
    %c0_65 = arith.constant 0 : index
    %109 = vector.load %arg4[%c13, %c0_65] : memref<27x128xf32, #tpu.memory_space<vmem>>, vector<1x128xf32>
    %110 = vector.broadcast %109 : vector<1x128xf32> to vector<32x128xf32>
    %111 = arith.mulf %92, %110 : vector<32x128xf32>
    %112 = arith.addf %108, %111 : vector<32x128xf32>
    %c16 = arith.constant 16 : index
    %c0_66 = arith.constant 0 : index
    %113 = vector.load %arg4[%c16, %c0_66] : memref<27x128xf32, #tpu.memory_space<vmem>>, vector<1x128xf32>
    %114 = vector.broadcast %113 : vector<1x128xf32> to vector<32x128xf32>
    %115 = arith.mulf %94, %114 : vector<32x128xf32>
    %116 = arith.addf %112, %115 : vector<32x128xf32>
    %c11 = arith.constant 11 : index
    %c0_67 = arith.constant 0 : index
    %117 = vector.load %arg4[%c11, %c0_67] : memref<27x128xf32, #tpu.memory_space<vmem>>, vector<1x128xf32>
    %118 = vector.broadcast %117 : vector<1x128xf32> to vector<32x128xf32>
    %119 = arith.mulf %90, %118 : vector<32x128xf32>
    %c14 = arith.constant 14 : index
    %c0_68 = arith.constant 0 : index
    %120 = vector.load %arg4[%c14, %c0_68] : memref<27x128xf32, #tpu.memory_space<vmem>>, vector<1x128xf32>
    %121 = vector.broadcast %120 : vector<1x128xf32> to vector<32x128xf32>
    %122 = arith.mulf %92, %121 : vector<32x128xf32>
    %123 = arith.addf %119, %122 : vector<32x128xf32>
    %c17 = arith.constant 17 : index
    %c0_69 = arith.constant 0 : index
    %124 = vector.load %arg4[%c17, %c0_69] : memref<27x128xf32, #tpu.memory_space<vmem>>, vector<1x128xf32>
    %125 = vector.broadcast %124 : vector<1x128xf32> to vector<32x128xf32>
    %126 = arith.mulf %94, %125 : vector<32x128xf32>
    %127 = arith.addf %123, %126 : vector<32x128xf32>
    %c8_i32_70 = arith.constant 8 : i32
    %128 = tpu.dynamic_rotate %105 by %c8_i32_70 dim 1 : vector<32x128xf32>, i32 -> vector<32x128xf32>
    %cst_71 = arith.constant 0.000000e+00 : f32
    %129 = vector.broadcast %cst_71 : f32 to vector<32x128xf32>
    %130 = arith.select %2, %128, %129 : vector<32x128xi1>, vector<32x128xf32>
    %131 = arith.addf %116, %130 : vector<32x128xf32>
    %c120_i32_72 = arith.constant 120 : i32
    %132 = tpu.dynamic_rotate %127 by %c120_i32_72 dim 1 : vector<32x128xf32>, i32 -> vector<32x128xf32>
    %cst_73 = arith.constant 0.000000e+00 : f32
    %133 = vector.broadcast %cst_73 : f32 to vector<32x128xf32>
    %134 = arith.select %4, %132, %133 : vector<32x128xi1>, vector<32x128xf32>
    %135 = arith.addf %131, %134 : vector<32x128xf32>
    %cst_74 = arith.constant 0.000000e+00 : f32
    %136 = vector.broadcast %cst_74 : f32 to vector<32x128xf32>
    %137 = arith.cmpf ogt, %135, %136 : vector<32x128xf32>
    %cst_75 = arith.constant 0.000000e+00 : f32
    %138 = vector.broadcast %cst_75 : f32 to vector<32x128xf32>
    %139 = arith.minimumf %135, %138 : vector<32x128xf32>
    %140 = math.exp %139 : vector<32x128xf32>
    %cst_76 = arith.constant 1.000000e+00 : f32
    %141 = vector.broadcast %cst_76 : f32 to vector<32x128xf32>
    %142 = arith.subf %140, %141 : vector<32x128xf32>
    %143 = arith.select %137, %135, %142 : vector<32x128xi1>, vector<32x128xf32>
    %144 = arith.truncf %143 : vector<32x128xf32> to vector<32x128xbf16>
    %c1_77 = arith.constant 1 : index
    %c0_78 = arith.constant 0 : index
    %c0_79 = arith.constant 0 : index
    %145 = vector.load %arg5[%c1_77, %c0_78, %c0_79] : memref<3x128x128xbf16, #tpu.memory_space<vmem>>, vector<1x128x128xbf16>
    %146 = vector.shape_cast %145 : vector<1x128x128xbf16> to vector<128x128xbf16>
    %cst_80 = arith.constant dense<0.000000e+00> : vector<32x128xf32>
    %147 = tpu.matmul %144, %146, %cst_80 {dimension_numbers = #tpu.dot_dimension_numbers<[1], [0], [0], [1], [0, 0, 1, 1], [], []>} : vector<32x128xbf16>, vector<128x128xbf16>, vector<32x128xf32> -> vector<32x128xf32>
    %cst_81 = arith.constant 0.000000e+00 : f32
    %148 = vector.broadcast %cst_81 : f32 to vector<32x128xf32>
    %149 = arith.cmpf ogt, %147, %148 : vector<32x128xf32>
    %cst_82 = arith.constant 0.000000e+00 : f32
    %150 = vector.broadcast %cst_82 : f32 to vector<32x128xf32>
    %151 = arith.minimumf %147, %150 : vector<32x128xf32>
    %152 = math.exp %151 : vector<32x128xf32>
    %cst_83 = arith.constant 1.000000e+00 : f32
    %153 = vector.broadcast %cst_83 : f32 to vector<32x128xf32>
    %154 = arith.subf %152, %153 : vector<32x128xf32>
    %155 = arith.select %149, %147, %154 : vector<32x128xi1>, vector<32x128xf32>
    %156 = vector.shape_cast %155 : vector<32x128xf32> to vector<2x16x128xf32>
    %c0_84 = arith.constant 0 : index
    %c8_85 = arith.constant 8 : index
    %c0_86 = arith.constant 0 : index
    %157 = vector.load %arg9[%c0_84, %c8_85, %c0_86] : memref<2x25x128xf32, #tpu.memory_space<vmem>>, vector<2x16x128xf32>
    tpu.vector_store %arg9[%c0_84, %c8_85, %c0_86], %156 {strides = array<i32>} : memref<2x25x128xf32, #tpu.memory_space<vmem>>, vector<2x16x128xf32>,
    %c0_87 = arith.constant 0 : index
    %c7_88 = arith.constant 7 : index
    %c0_89 = arith.constant 0 : index
    %158 = vector.load %arg9[%c0_87, %c7_88, %c0_89] : memref<2x25x128xf32, #tpu.memory_space<vmem>>, vector<2x16x128xf32>
    %159 = vector.shape_cast %158 : vector<2x16x128xf32> to vector<32x128xf32>
    %c0_90 = arith.constant 0 : index
    %c8_91 = arith.constant 8 : index
    %c0_92 = arith.constant 0 : index
    %160 = vector.load %arg9[%c0_90, %c8_91, %c0_92] : memref<2x25x128xf32, #tpu.memory_space<vmem>>, vector<2x16x128xf32>
    %161 = vector.shape_cast %160 : vector<2x16x128xf32> to vector<32x128xf32>
    %c0_93 = arith.constant 0 : index
    %c9_94 = arith.constant 9 : index
    %c0_95 = arith.constant 0 : index
    %162 = vector.load %arg9[%c0_93, %c9_94, %c0_95] : memref<2x25x128xf32, #tpu.memory_space<vmem>>, vector<2x16x128xf32>
    %163 = vector.shape_cast %162 : vector<2x16x128xf32> to vector<32x128xf32>
    %c18 = arith.constant 18 : index
    %c0_96 = arith.constant 0 : index
    %164 = vector.load %arg4[%c18, %c0_96] : memref<27x128xf32, #tpu.memory_space<vmem>>, vector<1x128xf32>
    %165 = vector.broadcast %164 : vector<1x128xf32> to vector<32x128xf32>
    %166 = arith.mulf %159, %165 : vector<32x128xf32>
    %c21 = arith.constant 21 : index
    %c0_97 = arith.constant 0 : index
    %167 = vector.load %arg4[%c21, %c0_97] : memref<27x128xf32, #tpu.memory_space<vmem>>, vector<1x128xf32>
    %168 = vector.broadcast %167 : vector<1x128xf32> to vector<32x128xf32>
    %169 = arith.mulf %161, %168 : vector<32x128xf32>
    %170 = arith.addf %166, %169 : vector<32x128xf32>
    %c24_98 = arith.constant 24 : index
    %c0_99 = arith.constant 0 : index
    %171 = vector.load %arg4[%c24_98, %c0_99] : memref<27x128xf32, #tpu.memory_space<vmem>>, vector<1x128xf32>
    %172 = vector.broadcast %171 : vector<1x128xf32> to vector<32x128xf32>
    %173 = arith.mulf %163, %172 : vector<32x128xf32>
    %174 = arith.addf %170, %173 : vector<32x128xf32>
    %c19 = arith.constant 19 : index
    %c0_100 = arith.constant 0 : index
    %175 = vector.load %arg4[%c19, %c0_100] : memref<27x128xf32, #tpu.memory_space<vmem>>, vector<1x128xf32>
    %176 = vector.broadcast %175 : vector<1x128xf32> to vector<32x128xf32>
    %177 = arith.mulf %159, %176 : vector<32x128xf32>
    %c22 = arith.constant 22 : index
    %c0_101 = arith.constant 0 : index
    %178 = vector.load %arg4[%c22, %c0_101] : memref<27x128xf32, #tpu.memory_space<vmem>>, vector<1x128xf32>
    %179 = vector.broadcast %178 : vector<1x128xf32> to vector<32x128xf32>
    %180 = arith.mulf %161, %179 : vector<32x128xf32>
    %181 = arith.addf %177, %180 : vector<32x128xf32>
    %c25 = arith.constant 25 : index
    %c0_102 = arith.constant 0 : index
    %182 = vector.load %arg4[%c25, %c0_102] : memref<27x128xf32, #tpu.memory_space<vmem>>, vector<1x128xf32>
    %183 = vector.broadcast %182 : vector<1x128xf32> to vector<32x128xf32>
    %184 = arith.mulf %163, %183 : vector<32x128xf32>
    %185 = arith.addf %181, %184 : vector<32x128xf32>
    %c20 = arith.constant 20 : index
    %c0_103 = arith.constant 0 : index
    %186 = vector.load %arg4[%c20, %c0_103] : memref<27x128xf32, #tpu.memory_space<vmem>>, vector<1x128xf32>
    %187 = vector.broadcast %186 : vector<1x128xf32> to vector<32x128xf32>
    %188 = arith.mulf %159, %187 : vector<32x128xf32>
    %c23 = arith.constant 23 : index
    %c0_104 = arith.constant 0 : index
    %189 = vector.load %arg4[%c23, %c0_104] : memref<27x128xf32, #tpu.memory_space<vmem>>, vector<1x128xf32>
    %190 = vector.broadcast %189 : vector<1x128xf32> to vector<32x128xf32>
    %191 = arith.mulf %161, %190 : vector<32x128xf32>
    %192 = arith.addf %188, %191 : vector<32x128xf32>
    %c26 = arith.constant 26 : index
    %c0_105 = arith.constant 0 : index
    %193 = vector.load %arg4[%c26, %c0_105] : memref<27x128xf32, #tpu.memory_space<vmem>>, vector<1x128xf32>
    %194 = vector.broadcast %193 : vector<1x128xf32> to vector<32x128xf32>
    %195 = arith.mulf %163, %194 : vector<32x128xf32>
    %196 = arith.addf %192, %195 : vector<32x128xf32>
    %c8_i32_106 = arith.constant 8 : i32
    %197 = tpu.dynamic_rotate %174 by %c8_i32_106 dim 1 : vector<32x128xf32>, i32 -> vector<32x128xf32>
    %cst_107 = arith.constant 0.000000e+00 : f32
    %198 = vector.broadcast %cst_107 : f32 to vector<32x128xf32>
    %199 = arith.select %2, %197, %198 : vector<32x128xi1>, vector<32x128xf32>
    %200 = arith.addf %185, %199 : vector<32x128xf32>
    %c120_i32_108 = arith.constant 120 : i32
    %201 = tpu.dynamic_rotate %196 by %c120_i32_108 dim 1 : vector<32x128xf32>, i32 -> vector<32x128xf32>
    %cst_109 = arith.constant 0.000000e+00 : f32
    %202 = vector.broadcast %cst_109 : f32 to vector<32x128xf32>
    %203 = arith.select %4, %201, %202 : vector<32x128xi1>, vector<32x128xf32>
    %204 = arith.addf %200, %203 : vector<32x128xf32>
    %cst_110 = arith.constant 0.000000e+00 : f32
    %205 = vector.broadcast %cst_110 : f32 to vector<32x128xf32>
    %206 = arith.cmpf ogt, %204, %205 : vector<32x128xf32>
    %cst_111 = arith.constant 0.000000e+00 : f32
    %207 = vector.broadcast %cst_111 : f32 to vector<32x128xf32>
    %208 = arith.minimumf %204, %207 : vector<32x128xf32>
    %209 = math.exp %208 : vector<32x128xf32>
    %cst_112 = arith.constant 1.000000e+00 : f32
    %210 = vector.broadcast %cst_112 : f32 to vector<32x128xf32>
    %211 = arith.subf %209, %210 : vector<32x128xf32>
    %212 = arith.select %206, %204, %211 : vector<32x128xi1>, vector<32x128xf32>
    %213 = arith.truncf %212 : vector<32x128xf32> to vector<32x128xbf16>
    %c2_113 = arith.constant 2 : index
    %c0_114 = arith.constant 0 : index
    %c0_115 = arith.constant 0 : index
    %214 = vector.load %arg5[%c2_113, %c0_114, %c0_115] : memref<3x128x128xbf16, #tpu.memory_space<vmem>>, vector<1x128x128xbf16>
    %215 = vector.shape_cast %214 : vector<1x128x128xbf16> to vector<128x128xbf16>
    %cst_116 = arith.constant dense<0.000000e+00> : vector<32x128xf32>
    %216 = tpu.matmul %213, %215, %cst_116 {dimension_numbers = #tpu.dot_dimension_numbers<[1], [0], [0], [1], [0, 0, 1, 1], [], []>} : vector<32x128xbf16>, vector<128x128xbf16>, vector<32x128xf32> -> vector<32x128xf32>
    %cst_117 = arith.constant 0.000000e+00 : f32
    %217 = vector.broadcast %cst_117 : f32 to vector<32x128xf32>
    %218 = arith.cmpf ogt, %216, %217 : vector<32x128xf32>
    %cst_118 = arith.constant 0.000000e+00 : f32
    %219 = vector.broadcast %cst_118 : f32 to vector<32x128xf32>
    %220 = arith.minimumf %216, %219 : vector<32x128xf32>
    %221 = math.exp %220 : vector<32x128xf32>
    %cst_119 = arith.constant 1.000000e+00 : f32
    %222 = vector.broadcast %cst_119 : f32 to vector<32x128xf32>
    %223 = arith.subf %221, %222 : vector<32x128xf32>
    %224 = arith.select %218, %216, %223 : vector<32x128xi1>, vector<32x128xf32>
    %225 = arith.addf %224, %13 : vector<32x128xf32>
    %226 = vector.shape_cast %225 : vector<32x128xf32> to vector<2x16x128xf32>
    %c0_120 = arith.constant 0 : index
    %c8_121 = arith.constant 8 : index
    %c0_122 = arith.constant 0 : index
    %227 = vector.load %arg9[%c0_120, %c8_121, %c0_122] : memref<2x25x128xf32, #tpu.memory_space<vmem>>, vector<2x16x128xf32>
    tpu.vector_store %arg9[%c0_120, %c8_121, %c0_122], %226 {strides = array<i32>} : memref<2x25x128xf32, #tpu.memory_space<vmem>>, vector<2x16x128xf32>,
    %c0_123 = arith.constant 0 : index
    %c7_124 = arith.constant 7 : index
    %c0_125 = arith.constant 0 : index
    %228 = vector.load %arg9[%c0_123, %c7_124, %c0_125] : memref<2x25x128xf32, #tpu.memory_space<vmem>>, vector<2x16x128xf32>
    %229 = vector.shape_cast %228 : vector<2x16x128xf32> to vector<32x128xf32>
    %c0_126 = arith.constant 0 : index
    %c8_127 = arith.constant 8 : index
    %c0_128 = arith.constant 0 : index
    %230 = vector.load %arg9[%c0_126, %c8_127, %c0_128] : memref<2x25x128xf32, #tpu.memory_space<vmem>>, vector<2x16x128xf32>
    %231 = vector.shape_cast %230 : vector<2x16x128xf32> to vector<32x128xf32>
    %c0_129 = arith.constant 0 : index
    %c9_130 = arith.constant 9 : index
    %c0_131 = arith.constant 0 : index
    %232 = vector.load %arg9[%c0_129, %c9_130, %c0_131] : memref<2x25x128xf32, #tpu.memory_space<vmem>>, vector<2x16x128xf32>
    %233 = vector.shape_cast %232 : vector<2x16x128xf32> to vector<32x128xf32>
    %234 = tpu.concatenate %229, %231, %233 in 1 : vector<32x128xf32>, vector<32x128xf32>, vector<32x128xf32> -> vector<32x384xf32>
    %235 = arith.truncf %234 : vector<32x384xf32> to vector<32x384xbf16>
    %c0_132 = arith.constant 0 : index
    %c0_133 = arith.constant 0 : index
    %236 = vector.load %arg6[%c0_132, %c0_133] : memref<384x128xbf16, #tpu.memory_space<vmem>>, vector<384x128xbf16>
    %cst_134 = arith.constant dense<0.000000e+00> : vector<32x128xf32>
    %237 = tpu.matmul %235, %236, %cst_134 {dimension_numbers = #tpu.dot_dimension_numbers<[1], [0], [0], [1], [0, 0, 1, 1], [], []>} : vector<32x384xbf16>, vector<384x128xbf16>, vector<32x128xf32> -> vector<32x128xf32>
    %c0_135 = arith.constant 0 : index
    %c0_136 = arith.constant 0 : index
    %238 = vector.load %arg7[%c0_135, %c0_136] : memref<1x128xf32, #tpu.memory_space<vmem>>, vector<1x128xf32>
    %239 = vector.broadcast %238 : vector<1x128xf32> to vector<32x128xf32>
    %240 = arith.addf %237, %239 : vector<32x128xf32>
    %cst_137 = arith.constant 0.000000e+00 : f32
    %241 = vector.broadcast %cst_137 : f32 to vector<32x128xf32>
    %242 = arith.maximumf %240, %241 : vector<32x128xf32>
    %c0_138 = arith.constant 0 : index
    %c0_139 = arith.constant 0 : index
    %243 = vector.load %arg8[%c0_138, %c0_139] : memref<32x128xf32, #tpu.memory_space<vmem>>, vector<32x128xf32>
    tpu.vector_store %arg8[%c0_138, %c0_139], %242 {strides = array<i32>} : memref<32x128xf32, #tpu.memory_space<vmem>>, vector<32x128xf32>,
    return
  }
  func.func @transform_0(%arg0: i32) -> (i32, i32) {
    %c0_i32 = arith.constant 0 : i32
    %c0_i32_0 = arith.constant 0 : i32
    return %arg0, %c0_i32 : i32, i32
  }
  func.func @transform_1(%arg0: i32) -> (i32, i32) {
    %c0_i32 = arith.constant 0 : i32
    %c0_i32_0 = arith.constant 0 : i32
    %c0_i32_1 = arith.constant 0 : i32
    return %c0_i32, %c0_i32_0 : i32, i32
  }
  func.func @transform_2(%arg0: i32) -> (i32, i32) {
    %c0_i32 = arith.constant 0 : i32
    %c0_i32_0 = arith.constant 0 : i32
    %c0_i32_1 = arith.constant 0 : i32
    return %c0_i32, %c0_i32_0 : i32, i32
  }
  func.func @transform_3(%arg0: i32) -> (i32, i32) {
    %c0_i32 = arith.constant 0 : i32
    %c0_i32_0 = arith.constant 0 : i32
    %c0_i32_1 = arith.constant 0 : i32
    return %c0_i32, %c0_i32_0 : i32, i32
  }
  func.func @transform_4(%arg0: i32) -> (i32, i32, i32) {
    %c0_i32 = arith.constant 0 : i32
    %c0_i32_0 = arith.constant 0 : i32
    %c0_i32_1 = arith.constant 0 : i32
    %c0_i32_2 = arith.constant 0 : i32
    return %c0_i32, %c0_i32_0, %c0_i32_1 : i32, i32, i32
  }
  func.func @transform_5(%arg0: i32) -> (i32, i32) {
    %c0_i32 = arith.constant 0 : i32
    %c0_i32_0 = arith.constant 0 : i32
    %c0_i32_1 = arith.constant 0 : i32
    return %c0_i32, %c0_i32_0 : i32, i32
  }
  func.func @transform_6(%arg0: i32) -> (i32, i32) {
    %c0_i32 = arith.constant 0 : i32
    %c0_i32_0 = arith.constant 0 : i32
    %c0_i32_1 = arith.constant 0 : i32
    return %c0_i32, %c0_i32_0 : i32, i32
  }
  func.func @transform_7(%arg0: i32) -> (i32, i32) {
    %c0_i32 = arith.constant 0 : i32
    %c0_i32_0 = arith.constant 0 : i32
    return %arg0, %c0_i32 : i32, i32
  }
}

</mosaic_0001>

<llo_original>
// kernel: tile.28
$region0: #{tile.28}
  #allocation0 [shape = 's32[1]{0}', space=sflag, size = 0x4, scoped, tag = 'scoped memory for tile.28']
  %s0 = inlined_call_operand.vmem [shape: f32[8], index: 0, kind: input, shape index: {}]
  %s1 = inlined_call_operand.vmem [shape: f32[16,8], index: 1, kind: output, shape index: {}]
  // Predicated region
  $region2: #{tile.28} parent=0 // pred_check
    _
  $region3: #{tile.28} parent=0 // pred_check_branch
    %3 = sbr.rel (0) target = $region5
  $region4: #{tile.28} parent=0 // pred_region
    _
  $region5: #{tile.28} parent=0 // pred_fallthru
    _
  %v4 = vld [vmem:[%s0] ss:$0 sm:$0xff]
  %5 = vst [vmem:[%s1] sm:$0xff] %v4
  %s6 = scalar_lea.vmem %s1, 8
  %7 = vst [vmem:[%s6] sm:$0xff] %v4

// kernel: tile.29
$region0: #{tile.29}
  %s0 = inlined_call_operand.vmem [shape: f32[16,8], index: 0, kind: input, shape index: {}]
  %s1 = inlined_call_operand.vmem [shape: f32[1,128], index: 1, kind: output, shape index: {}]
  $region1: #{tile.29} parent=0
    #allocation0 [shape = 'u8[4096]{0}', space=vmem, size = 0x1000, scoped, tag = 'scoped mem for output reshape']
    %v2 = vld [vmem:[%s0] sm:$0x1]
    %vm3 = vcmask 64512
    %4 = vst.msk [vmem:[#allocation0] sm:$0x1] %vm3, %v2
    %s5 = scalar_lea.vmem %s0, 15
    %v6 = vld [vmem:[%s5] sm:$0x1]
    %7 = vrot.lane.b32.xlu0 %v6, 120
    %v8 = vpop.permute.xlu0 %7
    %vm9 = vcmask 1048512
    %10 = vst.msk [vmem:[#allocation0] sm:$0x1] %vm9, %v8
    %s11 = scalar_lea.vmem %s0, 14
    %v12 = vld [vmem:[%s11] sm:$0x1]
    %13 = vrot.lane.b32.xlu0 %v12, 112
    %v14 = vpop.permute.xlu0 %13
    %vm15 = vcmask 982912
    %16 = vst.msk [vmem:[#allocation0] sm:$0x1] %vm15, %v14
    %s17 = scalar_lea.vmem %s0, 13
    %v18 = vld [vmem:[%s17] sm:$0x1]
    %19 = vrot.lane.b32.xlu0 %v18, 104
    %v20 = vpop.permute.xlu0 %19
    %vm21 = vcmask 917312
    %22 = vst.msk [vmem:[#allocation0] sm:$0x1] %vm21, %v20
    %s23 = scalar_lea.vmem %s0, 12
    %v24 = vld [vmem:[%s23] sm:$0x1]
    %25 = vrot.lane.b32.xlu0 %v24, 96
    %v26 = vpop.permute.xlu0 %25
    %vm27 = vcmask 851712
    %28 = vst.msk [vmem:[#allocation0] sm:$0x1] %vm27, %v26
    %s29 = scalar_lea.vmem %s0, 11
    %v30 = vld [vmem:[%s29] sm:$0x1]
    %31 = vrot.lane.b32.xlu0 %v30, 88
    %v32 = vpop.permute.xlu0 %31
    %vm33 = vcmask 786112
    %34 = vst.msk [vmem:[#allocation0] sm:$0x1] %vm33, %v32
    %s35 = scalar_lea.vmem %s0, 10
    %v36 = vld [vmem:[%s35] sm:$0x1]
    %37 = vrot.lane.b32.xlu0 %v36, 80
    %v38 = vpop.permute.xlu0 %37
    %vm39 = vcmask 720512
    %40 = vst.msk [vmem:[#allocation0] sm:$0x1] %vm39, %v38
    %s41 = scalar_lea.vmem %s0, 9
    %v42 = vld [vmem:[%s41] sm:$0x1]
    %43 = vrot.lane.b32.xlu0 %v42, 72
    %v44 = vpop.permute.xlu0 %43
    %vm45 = vcmask 654912
    %46 = vst.msk [vmem:[#allocation0] sm:$0x1] %vm45, %v44
    %s47 = scalar_lea.vmem %s0, 8
    %v48 = vld [vmem:[%s47] sm:$0x1]
    %49 = vrot.lane.b32.xlu0 %v48, 64
    %v50 = vpop.permute.xlu0 %49
    %vm51 = vcmask 589312
    %52 = vst.msk [vmem:[#allocation0] sm:$0x1] %vm51, %v50
    %s53 = scalar_lea.vmem %s0, 7
    %v54 = vld [vmem:[%s53] sm:$0x1]
    %55 = vrot.lane.b32.xlu0 %v54, 56
    %v56 = vpop.permute.xlu0 %55
    %vm57 = vcmask 523712
    %58 = vst.msk [vmem:[#allocation0] sm:$0x1] %vm57, %v56
    %s59 = scalar_lea.vmem %s0, 6
    %v60 = vld [vmem:[%s59] sm:$0x1]
    %61 = vrot.lane.b32.xlu0 %v60, 48
    %v62 = vpop.permute.xlu0 %61
    %vm63 = vcmask 458112
    %64 = vst.msk [vmem:[#allocation0] sm:$0x1] %vm63, %v62
    %s65 = scalar_lea.vmem %s0, 5
    %v66 = vld [vmem:[%s65] sm:$0x1]
    %67 = vrot.lane.b32.xlu0 %v66, 40
    %v68 = vpop.permute.xlu0 %67
    %vm69 = vcmask 392512
    %70 = vst.msk [vmem:[#allocation0] sm:$0x1] %vm69, %v68
    %s71 = scalar_lea.vmem %s0, 4
    %v72 = vld [vmem:[%s71] sm:$0x1]
    %73 = vrot.lane.b32.xlu0 %v72, 32
    %v74 = vpop.permute.xlu0 %73
    %vm75 = vcmask 326912
    %76 = vst.msk [vmem:[#allocation0] sm:$0x1] %vm75, %v74
    %s77 = scalar_lea.vmem %s0, 3
    %v78 = vld [vmem:[%s77] sm:$0x1]
    %79 = vrot.lane.b32.xlu0 %v78, 24
    %v80 = vpop.permute.xlu0 %79
    %vm81 = vcmask 261312
    %82 = vst.msk [vmem:[#allocation0] sm:$0x1] %vm81, %v80
    %s83 = scalar_lea.vmem %s0, 2
    %v84 = vld [vmem:[%s83] sm:$0x1]
    %85 = vrot.lane.b32.xlu0 %v84, 16
    %v86 = vpop.permute.xlu0 %85
    %vm87 = vcmask 195712
    %88 = vst.msk [vmem:[#allocation0] sm:$0x1] %vm87, %v86
    %s89 = scalar_lea.vmem %s0, 1
    %v90 = vld [vmem:[%s89] sm:$0x1]
    %91 = vrot.lane.b32.xlu0 %v90, 8
    %v92 = vpop.permute.xlu0 %91
    %vm93 = vcmask 130112
    %94 = vst.msk [vmem:[#allocation0] sm:$0x1] %vm93, %v92
    %s96 = sshllo.u32 0, 1
    %v98 = vld [vmem:[#allocation0] sm:%s96]
    %s99 = sshllo.u32 0, 1
    %100 = vst [vmem:[%s1] sm:%s99] %v98

// kernel: cpm_forward.1
$region0: #{cpm_forward.1}
  #allocation0 [shape = 'u32[]', space=smem, size = 0x4, offset = 0x4, fixed_abs, tag = 'smem constant byte address 0x4 - core index']
  #allocation1 [shape = 'u32[144,128]{1,0:T(1,128)}', space=vmem, size = 0x12000, scoped, tag = 'internal scratch']
  #allocation2 [shape = 'f32[2,25,128]{2,1,0:T(8,128)}', space=vmem, size = 0x8000, scoped, tag = 'scratch operand']
  %s0 = inlined_call_operand.vmem [shape: f32[32,64], index: 0, kind: input, shape index: {}]
  %s1 = inlined_call_operand.vmem [shape: bf16[64,128], index: 1, kind: input, shape index: {}]
  %s2 = inlined_call_operand.vmem [shape: f32[1,128], index: 2, kind: input, shape index: {}]
  %s3 = inlined_call_operand.vmem [shape: f32[27,128], index: 3, kind: input, shape index: {}]
  %s4 = inlined_call_operand.vmem [shape: bf16[3,128,128], index: 4, kind: input, shape index: {}]
  %s5 = inlined_call_operand.vmem [shape: bf16[384,128], index: 5, kind: input, shape index: {}]
  %s6 = inlined_call_operand.vmem [shape: f32[1,128], index: 6, kind: input, shape index: {}]
  %s7 = inlined_call_operand.vmem [shape: f32[32,128], index: 7, kind: output, shape index: {}]
  %s8 = sld [smem:[#allocation0]]
  $region38: #{cpm_forward.1} parent=0
    _
  %s10 = ssub.s32 1, %s8
  %s11 = scalar_select 0, %s10, %s8
  // Predicated region
  $region2: #{cpm_forward.1} parent=0 // pred_check
    _
  $region3: #{cpm_forward.1} parent=0 // pred_check_branch
    %13 = sbr.rel (0) target = $region5
  $region4: #{cpm_forward.1} parent=0 // pred_region
    _
  $region5: #{cpm_forward.1} parent=0 // pred_fallthru
    _
  // Predicated region
  $region6: #{cpm_forward.1} parent=0 // pred_check
    _
  $region7: #{cpm_forward.1} parent=0 // pred_check_branch
    %15 = sbr.rel (0) target = $region9
  $region8: #{cpm_forward.1} parent=0 // pred_region
    _
  $region9: #{cpm_forward.1} parent=0 // pred_fallthru
    _
  // Predicated region
  $region10: #{cpm_forward.1} parent=0 // pred_check
    _
  $region11: #{cpm_forward.1} parent=0 // pred_check_branch
    %17 = sbr.rel (0) target = $region13
  $region12: #{cpm_forward.1} parent=0 // pred_region
    _
  $region13: #{cpm_forward.1} parent=0 // pred_fallthru
    _
  // Predicated region
  $region14: #{cpm_forward.1} parent=0 // pred_check
    _
  $region15: #{cpm_forward.1} parent=0 // pred_check_branch
    %19 = sbr.rel (0) target = $region17
  $region16: #{cpm_forward.1} parent=0 // pred_region
    _
  $region17: #{cpm_forward.1} parent=0 // pred_fallthru
    _
  // Predicated region
  $region18: #{cpm_forward.1} parent=0 // pred_check
    _
  $region19: #{cpm_forward.1} parent=0 // pred_check_branch
    %21 = sbr.rel (0) target = $region21
  $region20: #{cpm_forward.1} parent=0 // pred_region
    _
  $region21: #{cpm_forward.1} parent=0 // pred_fallthru
    _
  // Predicated region
  $region22: #{cpm_forward.1} parent=0 // pred_check
    _
  $region23: #{cpm_forward.1} parent=0 // pred_check_branch
    %23 = sbr.rel (0) target = $region25
  $region24: #{cpm_forward.1} parent=0 // pred_region
    _
  $region25: #{cpm_forward.1} parent=0 // pred_fallthru
    _
  // Predicated region
  $region26: #{cpm_forward.1} parent=0 // pred_check
    _
  $region27: #{cpm_forward.1} parent=0 // pred_check_branch
    %25 = sbr.rel (0) target = $region29
  $region28: #{cpm_forward.1} parent=0 // pred_region
    _
  $region29: #{cpm_forward.1} parent=0 // pred_fallthru
    _
  %v27 = vlaneseq
  %v28 = vand.u32 %v27, 127
  %vm29 = vcmp.ge.s32.totalorder %v28, 8
  %vm30 = vcmp.lt.s32.totalorder %v28, 120
  %v31 = vld [vmem:[%s0] sm:$0xff]
  %v32 = vld [vmem:[%s0 + $0x8] sm:$0xff]
  %v33 = vld [vmem:[%s0 + $0x10] sm:$0xff]
  %v34 = vld [vmem:[%s0 + $0x18] sm:$0xff]
  %v35 = vpack.c.bf16 %v32, %v31
  %v36 = vpack.c.bf16 %v34, %v33
  %v37 = vld [vmem:[%s1] sm:$0xf]
  %v38 = vld [vmem:[%s1 + $0x4] sm:$0xf]
  %v39 = vld [vmem:[%s1 + $0x8] sm:$0xf]
  %v40 = vld [vmem:[%s1 + $0xc] sm:$0xf]
  %v41 = vld [vmem:[%s1 + $0x10] sm:$0xf]
  %v42 = vld [vmem:[%s1 + $0x14] sm:$0xf]
  %v43 = vld [vmem:[%s1 + $0x18] sm:$0xf]
  %v44 = vld [vmem:[%s1 + $0x1c] sm:$0xf]
  %v45 = vld [vmem:[%s2] sm:$0x1]
  %v47 = vlaneseq
  %v48 = vshrl.u32 %v47, 7
  %v49 = vsub.s32 0, %v48
  %v50 = vrot.slane %v45, %v49
  %v60 = vunpack.c.l.b16 %v37
  %v61 = vunpack.c.l.b16 %v38
  %v62 = vunpack.c.l.b16 %v39
  %v63 = vunpack.c.l.b16 %v40
  %v64 = vunpack.c.l.b16 %v41
  %v65 = vunpack.c.l.b16 %v42
  %v66 = vunpack.c.l.b16 %v43
  %v67 = vunpack.c.l.b16 %v44
  %v68 = vpack.c.b16 %v61, %v60
  %v69 = vpack.c.b16 %v63, %v62
  %v70 = vpack.c.b16 %v65, %v64
  %v71 = vpack.c.b16 %v67, %v66
  %vm76 = vcmask 523264
  %v78 = vsel %vm76, %v35, 0
  %v81 = vsel %vm76, %v36, 0
  %83 = vmatprep.subr.bf16.mxu0 0
  %84 = vmatpush1.bf16.msra.mxu0 %v68
  %85 = vmatprep.subr.bf16.mxu0 0
  %86 = vmatpush1.bf16.msra.mxu0 %v69
  %87 = vmatprep.subr.bf16.mxu0 0
  %88 = vmatpush1.bf16.msra.mxu0 %v70
  %89 = vmatprep.subr.bf16.mxu0 0
  %90 = vmatpush1.bf16.msra.mxu0 %v71
  %91 = vmatprep.subr.bf16.mxu0 0
  %92 = vmatpush1.bf16.msra.mxu0 0
  %93 = vmatprep.subr.bf16.mxu0 0
  %94 = vmatpush1.bf16.msra.mxu0 0
  %95 = vmatprep.subr.bf16.mxu0 0
  %96 = vmatpush1.bf16.msra.mxu0 0
  %97 = vmatprep.subr.bf16.mxu0 0
  %98 = vmatpush1.bf16.msra.mxu0 0
  %99 = vmatprep.subr.bf16.mxu0 0
  %100 = vmatpush1.bf16.msra.mxu0 0
  %101 = vmatprep.subr.bf16.mxu0 0
  %102 = vmatpush1.bf16.msra.mxu0 0
  %103 = vmatprep.subr.bf16.mxu0 0
  %104 = vmatpush1.bf16.msra.mxu0 0
  %105 = vmatprep.subr.bf16.mxu0 0
  %106 = vmatpush1.bf16.msra.mxu0 0
  %107 = vmatprep.subr.bf16.mxu0 0
  %108 = vmatpush1.bf16.msra.mxu0 0
  %109 = vmatprep.subr.bf16.mxu0 0
  %110 = vmatpush1.bf16.msra.mxu0 0
  %111 = vmatprep.subr.bf16.mxu0 0
  %112 = vmatpush1.bf16.msra.mxu0 0
  %113 = vmatprep.subr.bf16.mxu0 0
  %114 = vmatpush1.bf16.msra.mxu0 0
  %115 = vmatprep.mubr.bf16.mxu0 0
  %116 = vmatmul.mubr.bf16.gmra.mrb[0].mxu0 %v78
  %v117 = vpop.f32.mrb[0].mxu0
  %v118 = vadd.f32 %v50, %v117
  %v119 = vpop.f32.mrb[0].mxu0
  %v120 = vpop.f32.mrb[0].mxu0
  %v121 = vadd.f32 %v50, %v120
  %v122 = vpop.f32.mrb[0].mxu0
  %123 = vmatprep.mubr.bf16.mxu0 0
  %124 = vmatmul.mubr.bf16.gmra.mrb[0].mxu0 %v81
  %v125 = vpop.f32.mrb[0].mxu0
  %v126 = vadd.f32 %v50, %v125
  %v127 = vpop.f32.mrb[0].mxu0
  %v128 = vpop.f32.mrb[0].mxu0
  %v129 = vadd.f32 %v50, %v128
  %v130 = vpop.f32.mrb[0].mxu0
  %131 = vdwg.mxu0
  %v132 = vmax.f32 %v118, 0.0
  %v133 = vmax.f32 %v121, 0.0
  %v134 = vmax.f32 %v126, 0.0
  %v135 = vmax.f32 %v129, 0.0
  %136 = vst [vmem:[#allocation2 + $0x7] sm:$0x1] 0.0
  %137 = vst [vmem:[#allocation2 + $0x27] sm:$0x1] 0.0
  %138 = vst [vmem:[#allocation2 + $0x18] sm:$0x1] 0.0
  %139 = vst [vmem:[#allocation2 + $0x38] sm:$0x1] 0.0
  %140 = vst [vmem:[#allocation2 + $0x8] sm:$0xff] %v132
  %141 = vst [vmem:[#allocation2 + $0x10] sm:$0xff] %v133
  %142 = vst [vmem:[#allocation2 + $0x28] sm:$0xff] %v134
  %143 = vst [vmem:[#allocation2 + $0x30] sm:$0xff] %v135
  %v144 = vld [vmem:[#allocation2 + $0x7] sm:$0xff]
  %v145 = vld [vmem:[#allocation2 + $0xf] sm:$0xff]
  %v146 = vld [vmem:[#allocation2 + $0x27] sm:$0xff]
  %v147 = vld [vmem:[#allocation2 + $0x2f] sm:$0xff]
  %v148 = vld [vmem:[#allocation2 + $0x8] sm:$0xff]
  %v149 = vld [vmem:[#allocation2 + $0x10] sm:$0xff]
  %v150 = vld [vmem:[#allocation2 + $0x28] sm:$0xff]
  %v151 = vld [vmem:[#allocation2 + $0x30] sm:$0xff]
  %v152 = vld [vmem:[#allocation2 + $0x9] sm:$0xff]
  %v153 = vld [vmem:[#allocation2 + $0x11] sm:$0xff]
  %v154 = vld [vmem:[#allocation2 + $0x29] sm:$0xff]
  %v155 = vld [vmem:[#allocation2 + $0x31] sm:$0xff]
  %v156 = vld [vmem:[%s3] sm:$0x1]
  %v157 = vlaneseq
  %v158 = vshrl.u32 %v157, 7
  %v159 = vsub.s32 0, %v158
  %v160 = vrot.slane %v156, %v159
  %v161 = vmul.f32 %v144, %v160
  %v162 = vmul.f32 %v145, %v160
  %v163 = vmul.f32 %v146, %v160
  %v164 = vmul.f32 %v147, %v160
  %v165 = vld [vmem:[%s3 + $0x3] sm:$0x1]
  %v166 = vlaneseq
  %v167 = vshrl.u32 %v166, 7
  %v168 = vsub.s32 0, %v167
  %v169 = vrot.slane %v165, %v168
  %v170 = vmul.f32 %v148, %v169
  %v171 = vmul.f32 %v149, %v169
  %v172 = vmul.f32 %v150, %v169
  %v173 = vmul.f32 %v151, %v169
  %v174 = vadd.f32 %v161, %v170
  %v175 = vadd.f32 %v162, %v171
  %v176 = vadd.f32 %v163, %v172
  %v177 = vadd.f32 %v164, %v173
  %v178 = vld [vmem:[%s3 + $0x6] sm:$0x1]
  %v179 = vlaneseq
  %v180 = vshrl.u32 %v179, 7
  %v181 = vsub.s32 0, %v180
  %v182 = vrot.slane %v178, %v181
  %v183 = vmul.f32 %v152, %v182
  %v184 = vmul.f32 %v153, %v182
  %v185 = vmul.f32 %v154, %v182
  %v186 = vmul.f32 %v155, %v182
  %v187 = vadd.f32 %v174, %v183
  %v188 = vadd.f32 %v175, %v184
  %v189 = vadd.f32 %v176, %v185
  %v190 = vadd.f32 %v177, %v186
  %v191 = vld [vmem:[%s3 + $0x1] sm:$0x1]
  %v192 = vlaneseq
  %v193 = vshrl.u32 %v192, 7
  %v194 = vsub.s32 0, %v193
  %v195 = vrot.slane %v191, %v194
  %v196 = vmul.f32 %v144, %v195
  %v197 = vmul.f32 %v145, %v195
  %v198 = vmul.f32 %v146, %v195
  %v199 = vmul.f32 %v147, %v195
  %v200 = vld [vmem:[%s3 + $0x4] sm:$0x1]
  %v201 = vlaneseq
  %v202 = vshrl.u32 %v201, 7
  %v203 = vsub.s32 0, %v202
  %v204 = vrot.slane %v200, %v203
  %v205 = vmul.f32 %v148, %v204
  %v206 = vmul.f32 %v149, %v204
  %v207 = vmul.f32 %v150, %v204
  %v208 = vmul.f32 %v151, %v204
  %v209 = vadd.f32 %v196, %v205
  %v210 = vadd.f32 %v197, %v206
  %v211 = vadd.f32 %v198, %v207
  %v212 = vadd.f32 %v199, %v208
  %v213 = vld [vmem:[%s3 + $0x7] sm:$0x1]
  %v214 = vlaneseq
  %v215 = vshrl.u32 %v214, 7
  %v216 = vsub.s32 0, %v215
  %v217 = vrot.slane %v213, %v216
  %v218 = vmul.f32 %v152, %v217
  %v219 = vmul.f32 %v153, %v217
  %v220 = vmul.f32 %v154, %v217
  %v221 = vmul.f32 %v155, %v217
  %v222 = vadd.f32 %v209, %v218
  %v223 = vadd.f32 %v210, %v219
  %v224 = vadd.f32 %v211, %v220
  %v225 = vadd.f32 %v212, %v221
  %v226 = vld [vmem:[%s3 + $0x2] sm:$0x1]
  %v227 = vlaneseq
  %v228 = vshrl.u32 %v227, 7
  %v229 = vsub.s32 0, %v228
  %v230 = vrot.slane %v226, %v229
  %v231 = vmul.f32 %v144, %v230
  %v232 = vmul.f32 %v145, %v230
  %v233 = vmul.f32 %v146, %v230
  %v234 = vmul.f32 %v147, %v230
  %v235 = vld [vmem:[%s3 + $0x5] sm:$0x1]
  %v236 = vlaneseq
  %v237 = vshrl.u32 %v236, 7
  %v238 = vsub.s32 0, %v237
  %v239 = vrot.slane %v235, %v238
  %v240 = vmul.f32 %v148, %v239
  %v241 = vmul.f32 %v149, %v239
  %v242 = vmul.f32 %v150, %v239
  %v243 = vmul.f32 %v151, %v239
  %v244 = vadd.f32 %v231, %v240
  %v245 = vadd.f32 %v232, %v241
  %v246 = vadd.f32 %v233, %v242
  %v247 = vadd.f32 %v234, %v243
  %v248 = vld [vmem:[%s3 + $0x8] sm:$0x1]
  %v249 = vlaneseq
  %v250 = vshrl.u32 %v249, 7
  %v251 = vsub.s32 0, %v250
  %v252 = vrot.slane %v248, %v251
  %v253 = vmul.f32 %v152, %v252
  %v254 = vmul.f32 %v153, %v252
  %v255 = vmul.f32 %v154, %v252
  %v256 = vmul.f32 %v155, %v252
  %v257 = vadd.f32 %v244, %v253
  %v258 = vadd.f32 %v245, %v254
  %v259 = vadd.f32 %v246, %v255
  %v260 = vadd.f32 %v247, %v256
  %261 = vrot.lane.b32.xlu0 %v187, 8
  %v262 = vpop.permute.xlu0 %261
  %263 = vrot.lane.b32.xlu0 %v188, 8
  %v264 = vpop.permute.xlu0 %263
  %265 = vrot.lane.b32.xlu0 %v189, 8
  %v266 = vpop.permute.xlu0 %265
  %267 = vrot.lane.b32.xlu0 %v190, 8
  %v268 = vpop.permute.xlu0 %267
  %v269 = vsel %vm29, %v262, 0.0
  %v270 = vsel %vm29, %v264, 0.0
  %v271 = vsel %vm29, %v266, 0.0
  %v272 = vsel %vm29, %v268, 0.0
  %v273 = vadd.f32 %v222, %v269
  %v274 = vadd.f32 %v223, %v270
  %v275 = vadd.f32 %v224, %v271
  %v276 = vadd.f32 %v225, %v272
  %277 = vrot.lane.b32.xlu0 %v257, 120
  %v278 = vpop.permute.xlu0 %277
  %279 = vrot.lane.b32.xlu0 %v258, 120
  %v280 = vpop.permute.xlu0 %279
  %281 = vrot.lane.b32.xlu0 %v259, 120
  %v282 = vpop.permute.xlu0 %281
  %283 = vrot.lane.b32.xlu0 %v260, 120
  %v284 = vpop.permute.xlu0 %283
  %v285 = vsel %vm30, %v278, 0.0
  %v286 = vsel %vm30, %v280, 0.0
  %v287 = vsel %vm30, %v282, 0.0
  %v288 = vsel %vm30, %v284, 0.0
  %v289 = vadd.f32 %v273, %v285
  %v290 = vadd.f32 %v274, %v286
  %v291 = vadd.f32 %v275, %v287
  %v292 = vadd.f32 %v276, %v288
  %vm293 = vcmp.gt.f32.partialorder %v289, 0.0
  %vm294 = vcmp.gt.f32.partialorder %v290, 0.0
  %vm295 = vcmp.gt.f32.partialorder %v291, 0.0
  %vm296 = vcmp.gt.f32.partialorder %v292, 0.0
  %v297 = vmin.f32 %v289, 0.0
  %v298 = vmin.f32 %v290, 0.0
  %v299 = vmin.f32 %v291, 0.0
  %v300 = vmin.f32 %v292, 0.0
  %v301 = vmul.f32 %v297, 1.442695
  %v302 = vpow.pop %v301
  %v303 = vmul.f32 %v298, 1.442695
  %v304 = vpow.pop %v303
  %v305 = vmul.f32 %v299, 1.442695
  %v306 = vpow.pop %v305
  %v307 = vmul.f32 %v300, 1.442695
  %v308 = vpow.pop %v307
  %v309 = vsub.f32 %v302, 1.0
  %v310 = vsub.f32 %v304, 1.0
  %v311 = vsub.f32 %v306, 1.0
  %v312 = vsub.f32 %v308, 1.0
  %v313 = vsel %vm293, %v289, %v309
  %v314 = vsel %vm294, %v290, %v310
  %v315 = vsel %vm295, %v291, %v311
  %v316 = vsel %vm296, %v292, %v312
  %v317 = vpack.c.bf16 %v314, %v313
  %v318 = vpack.c.bf16 %v316, %v315
  %v319 = vld [vmem:[%s4] sm:$0xf]
  %v320 = vld [vmem:[%s4 + $0x4] sm:$0xf]
  %v321 = vld [vmem:[%s4 + $0x8] sm:$0xf]
  %v322 = vld [vmem:[%s4 + $0xc] sm:$0xf]
  %v323 = vld [vmem:[%s4 + $0x10] sm:$0xf]
  %v324 = vld [vmem:[%s4 + $0x14] sm:$0xf]
  %v325 = vld [vmem:[%s4 + $0x18] sm:$0xf]
  %v326 = vld [vmem:[%s4 + $0x1c] sm:$0xf]
  %v327 = vld [vmem:[%s4 + $0x20] sm:$0xf]
  %v328 = vld [vmem:[%s4 + $0x24] sm:$0xf]
  %v329 = vld [vmem:[%s4 + $0x28] sm:$0xf]
  %v330 = vld [vmem:[%s4 + $0x2c] sm:$0xf]
  %v331 = vld [vmem:[%s4 + $0x30] sm:$0xf]
  %v332 = vld [vmem:[%s4 + $0x34] sm:$0xf]
  %v333 = vld [vmem:[%s4 + $0x38] sm:$0xf]
  %v334 = vld [vmem:[%s4 + $0x3c] sm:$0xf]
  %v351 = vunpack.c.l.b16 %v319
  %v352 = vunpack.c.l.b16 %v320
  %v353 = vunpack.c.l.b16 %v321
  %v354 = vunpack.c.l.b16 %v322
  %v355 = vunpack.c.l.b16 %v323
  %v356 = vunpack.c.l.b16 %v324
  %v357 = vunpack.c.l.b16 %v325
  %v358 = vunpack.c.l.b16 %v326
  %v359 = vunpack.c.l.b16 %v327
  %v360 = vunpack.c.l.b16 %v328
  %v361 = vunpack.c.l.b16 %v329
  %v362 = vunpack.c.l.b16 %v330
  %v363 = vunpack.c.l.b16 %v331
  %v364 = vunpack.c.l.b16 %v332
  %v365 = vunpack.c.l.b16 %v333
  %v366 = vunpack.c.l.b16 %v334
  %v367 = vpack.c.b16 %v352, %v351
  %v368 = vpack.c.b16 %v354, %v353
  %v369 = vpack.c.b16 %v356, %v355
  %v370 = vpack.c.b16 %v358, %v357
  %v371 = vpack.c.b16 %v360, %v359
  %v372 = vpack.c.b16 %v362, %v361
  %v373 = vpack.c.b16 %v364, %v363
  %v374 = vpack.c.b16 %v366, %v365
  %383 = vmatprep.subr.bf16.mxu0 0
  %384 = vmatpush1.bf16.msra.mxu0 %v367
  %385 = vmatprep.subr.bf16.mxu0 0
  %386 = vmatpush1.bf16.msra.mxu0 %v368
  %387 = vmatprep.subr.bf16.mxu0 0
  %388 = vmatpush1.bf16.msra.mxu0 %v369
  %389 = vmatprep.subr.bf16.mxu0 0
  %390 = vmatpush1.bf16.msra.mxu0 %v370
  %391 = vmatprep.subr.bf16.mxu0 0
  %392 = vmatpush1.bf16.msra.mxu0 %v371
  %393 = vmatprep.subr.bf16.mxu0 0
  %394 = vmatpush1.bf16.msra.mxu0 %v372
  %395 = vmatprep.subr.bf16.mxu0 0
  %396 = vmatpush1.bf16.msra.mxu0 %v373
  %397 = vmatprep.subr.bf16.mxu0 0
  %398 = vmatpush1.bf16.msra.mxu0 %v374
  %399 = vmatprep.subr.bf16.mxu0 0
  %400 = vmatpush1.bf16.msra.mxu0 0
  %401 = vmatprep.subr.bf16.mxu0 0
  %402 = vmatpush1.bf16.msra.mxu0 0
  %403 = vmatprep.subr.bf16.mxu0 0
  %404 = vmatpush1.bf16.msra.mxu0 0
  %405 = vmatprep.subr.bf16.mxu0 0
  %406 = vmatpush1.bf16.msra.mxu0 0
  %407 = vmatprep.subr.bf16.mxu0 0
  %408 = vmatpush1.bf16.msra.mxu0 0
  %409 = vmatprep.subr.bf16.mxu0 0
  %410 = vmatpush1.bf16.msra.mxu0 0
  %411 = vmatprep.subr.bf16.mxu0 0
  %412 = vmatpush1.bf16.msra.mxu0 0
  %413 = vmatprep.subr.bf16.mxu0 0
  %414 = vmatpush1.bf16.msra.mxu0 0
  %415 = vmatprep.mubr.bf16.mxu0 0
  %416 = vmatmul.mubr.bf16.gmra.mrb[0].mxu0 %v317
  %v417 = vpop.f32.mrb[0].mxu0
  %v418 = vadd.f32 0.0, %v417
  %v419 = vpop.f32.mrb[0].mxu0
  %v420 = vpop.f32.mrb[0].mxu0
  %v421 = vadd.f32 0.0, %v420
  %v422 = vpop.f32.mrb[0].mxu0
  %423 = vmatprep.mubr.bf16.mxu0 0
  %424 = vmatmul.mubr.bf16.gmra.mrb[0].mxu0 %v318
  %v425 = vpop.f32.mrb[0].mxu0
  %v426 = vadd.f32 0.0, %v425
  %v427 = vpop.f32.mrb[0].mxu0
  %v428 = vpop.f32.mrb[0].mxu0
  %v429 = vadd.f32 0.0, %v428
  %v430 = vpop.f32.mrb[0].mxu0
  %431 = vdwg.mxu0
  %vm432 = vcmp.gt.f32.partialorder %v418, 0.0
  %vm433 = vcmp.gt.f32.partialorder %v421, 0.0
  %vm434 = vcmp.gt.f32.partialorder %v426, 0.0
  %vm435 = vcmp.gt.f32.partialorder %v429, 0.0
  %v436 = vmin.f32 %v418, 0.0
  %v437 = vmin.f32 %v421, 0.0
  %v438 = vmin.f32 %v426, 0.0
  %v439 = vmin.f32 %v429, 0.0
  %v440 = vmul.f32 %v436, 1.442695
  %v441 = vpow.pop %v440
  %v442 = vmul.f32 %v437, 1.442695
  %v443 = vpow.pop %v442
  %v444 = vmul.f32 %v438, 1.442695
  %v445 = vpow.pop %v444
  %v446 = vmul.f32 %v439, 1.442695
  %v447 = vpow.pop %v446
  %v448 = vsub.f32 %v441, 1.0
  %v449 = vsub.f32 %v443, 1.0
  %v450 = vsub.f32 %v445, 1.0
  %v451 = vsub.f32 %v447, 1.0
  %v452 = vsel %vm432, %v418, %v448
  %v453 = vsel %vm433, %v421, %v449
  %v454 = vsel %vm434, %v426, %v450
  %v455 = vsel %vm435, %v429, %v451
  %456 = vst [vmem:[#allocation2 + $0x8] sm:$0xff] %v452
  %457 = vst [vmem:[#allocation2 + $0x10] sm:$0xff] %v453
  %458 = vst [vmem:[#allocation2 + $0x28] sm:$0xff] %v454
  %459 = vst [vmem:[#allocation2 + $0x30] sm:$0xff] %v455
  %v460 = vld [vmem:[#allocation2 + $0x7] sm:$0xff]
  %v461 = vld [vmem:[#allocation2 + $0xf] sm:$0xff]
  %v462 = vld [vmem:[#allocation2 + $0x27] sm:$0xff]
  %v463 = vld [vmem:[#allocation2 + $0x2f] sm:$0xff]
  %v464 = vld [vmem:[#allocation2 + $0x8] sm:$0xff]
  %v465 = vld [vmem:[#allocation2 + $0x10] sm:$0xff]
  %v466 = vld [vmem:[#allocation2 + $0x28] sm:$0xff]
  %v467 = vld [vmem:[#allocation2 + $0x30] sm:$0xff]
  %v468 = vld [vmem:[#allocation2 + $0x9] sm:$0xff]
  %v469 = vld [vmem:[#allocation2 + $0x11] sm:$0xff]
  %v470 = vld [vmem:[#allocation2 + $0x29] sm:$0xff]
  %v471 = vld [vmem:[#allocation2 + $0x31] sm:$0xff]
  %v472 = vld [vmem:[%s3 + $0x9] sm:$0x1]
  %v473 = vlaneseq
  %v474 = vshrl.u32 %v473, 7
  %v475 = vsub.s32 0, %v474
  %v476 = vrot.slane %v472, %v475
  %v477 = vmul.f32 %v460, %v476
  %v478 = vmul.f32 %v461, %v476
  %v479 = vmul.f32 %v462, %v476
  %v480 = vmul.f32 %v463, %v476
  %v481 = vld [vmem:[%s3 + $0xc] sm:$0x1]
  %v482 = vlaneseq
  %v483 = vshrl.u32 %v482, 7
  %v484 = vsub.s32 0, %v483
  %v485 = vrot.slane %v481, %v484
  %v486 = vmul.f32 %v464, %v485
  %v487 = vmul.f32 %v465, %v485
  %v488 = vmul.f32 %v466, %v485
  %v489 = vmul.f32 %v467, %v485
  %v490 = vadd.f32 %v477, %v486
  %v491 = vadd.f32 %v478, %v487
  %v492 = vadd.f32 %v479, %v488
  %v493 = vadd.f32 %v480, %v489
  %v494 = vld [vmem:[%s3 + $0xf] sm:$0x1]
  %v495 = vlaneseq
  %v496 = vshrl.u32 %v495, 7
  %v497 = vsub.s32 0, %v496
  %v498 = vrot.slane %v494, %v497
  %v499 = vmul.f32 %v468, %v498
  %v500 = vmul.f32 %v469, %v498
  %v501 = vmul.f32 %v470, %v498
  %v502 = vmul.f32 %v471, %v498
  %v503 = vadd.f32 %v490, %v499
  %v504 = vadd.f32 %v491, %v500
  %v505 = vadd.f32 %v492, %v501
  %v506 = vadd.f32 %v493, %v502
  %v507 = vld [vmem:[%s3 + $0xa] sm:$0x1]
  %v508 = vlaneseq
  %v509 = vshrl.u32 %v508, 7
  %v510 = vsub.s32 0, %v509
  %v511 = vrot.slane %v507, %v510
  %v512 = vmul.f32 %v460, %v511
  %v513 = vmul.f32 %v461, %v511
  %v514 = vmul.f32 %v462, %v511
  %v515 = vmul.f32 %v463, %v511
  %v516 = vld [vmem:[%s3 + $0xd] sm:$0x1]
  %v517 = vlaneseq
  %v518 = vshrl.u32 %v517, 7
  %v519 = vsub.s32 0, %v518
  %v520 = vrot.slane %v516, %v519
  %v521 = vmul.f32 %v464, %v520
  %v522 = vmul.f32 %v465, %v520
  %v523 = vmul.f32 %v466, %v520
  %v524 = vmul.f32 %v467, %v520
  %v525 = vadd.f32 %v512, %v521
  %v526 = vadd.f32 %v513, %v522
  %v527 = vadd.f32 %v514, %v523
  %v528 = vadd.f32 %v515, %v524
  %v529 = vld [vmem:[%s3 + $0x10] sm:$0x1]
  %v530 = vlaneseq
  %v531 = vshrl.u32 %v530, 7
  %v532 = vsub.s32 0, %v531
  %v533 = vrot.slane %v529, %v532
  %v534 = vmul.f32 %v468, %v533
  %v535 = vmul.f32 %v469, %v533
  %v536 = vmul.f32 %v470, %v533
  %v537 = vmul.f32 %v471, %v533
  %v538 = vadd.f32 %v525, %v534
  %v539 = vadd.f32 %v526, %v535
  %v540 = vadd.f32 %v527, %v536
  %v541 = vadd.f32 %v528, %v537
  %v542 = vld [vmem:[%s3 + $0xb] sm:$0x1]
  %v543 = vlaneseq
  %v544 = vshrl.u32 %v543, 7
  %v545 = vsub.s32 0, %v544
  %v546 = vrot.slane %v542, %v545
  %v547 = vmul.f32 %v460, %v546
  %v548 = vmul.f32 %v461, %v546
  %v549 = vmul.f32 %v462, %v546
  %v550 = vmul.f32 %v463, %v546
  %v551 = vld [vmem:[%s3 + $0xe] sm:$0x1]
  %v552 = vlaneseq
  %v553 = vshrl.u32 %v552, 7
  %v554 = vsub.s32 0, %v553
  %v555 = vrot.slane %v551, %v554
  %v556 = vmul.f32 %v464, %v555
  %v557 = vmul.f32 %v465, %v555
  %v558 = vmul.f32 %v466, %v555
  %v559 = vmul.f32 %v467, %v555
  %v560 = vadd.f32 %v547, %v556
  %v561 = vadd.f32 %v548, %v557
  %v562 = vadd.f32 %v549, %v558
  %v563 = vadd.f32 %v550, %v559
  %v564 = vld [vmem:[%s3 + $0x11] sm:$0x1]
  %v565 = vlaneseq
  %v566 = vshrl.u32 %v565, 7
  %v567 = vsub.s32 0, %v566
  %v568 = vrot.slane %v564, %v567
  %v569 = vmul.f32 %v468, %v568
  %v570 = vmul.f32 %v469, %v568
  %v571 = vmul.f32 %v470, %v568
  %v572 = vmul.f32 %v471, %v568
  %v573 = vadd.f32 %v560, %v569
  %v574 = vadd.f32 %v561, %v570
  %v575 = vadd.f32 %v562, %v571
  %v576 = vadd.f32 %v563, %v572
  %577 = vrot.lane.b32.xlu0 %v503, 8
  %v578 = vpop.permute.xlu0 %577
  %579 = vrot.lane.b32.xlu0 %v504, 8
  %v580 = vpop.permute.xlu0 %579
  %581 = vrot.lane.b32.xlu0 %v505, 8
  %v582 = vpop.permute.xlu0 %581
  %583 = vrot.lane.b32.xlu0 %v506, 8
  %v584 = vpop.permute.xlu0 %583
  %v585 = vsel %vm29, %v578, 0.0
  %v586 = vsel %vm29, %v580, 0.0
  %v587 = vsel %vm29, %v582, 0.0
  %v588 = vsel %vm29, %v584, 0.0
  %v589 = vadd.f32 %v538, %v585
  %v590 = vadd.f32 %v539, %v586
  %v591 = vadd.f32 %v540, %v587
  %v592 = vadd.f32 %v541, %v588
  %593 = vrot.lane.b32.xlu0 %v573, 120
  %v594 = vpop.permute.xlu0 %593
  %595 = vrot.lane.b32.xlu0 %v574, 120
  %v596 = vpop.permute.xlu0 %595
  %597 = vrot.lane.b32.xlu0 %v575, 120
  %v598 = vpop.permute.xlu0 %597
  %599 = vrot.lane.b32.xlu0 %v576, 120
  %v600 = vpop.permute.xlu0 %599
  %v601 = vsel %vm30, %v594, 0.0
  %v602 = vsel %vm30, %v596, 0.0
  %v603 = vsel %vm30, %v598, 0.0
  %v604 = vsel %vm30, %v600, 0.0
  %v605 = vadd.f32 %v589, %v601
  %v606 = vadd.f32 %v590, %v602
  %v607 = vadd.f32 %v591, %v603
  %v608 = vadd.f32 %v592, %v604
  %vm609 = vcmp.gt.f32.partialorder %v605, 0.0
  %vm610 = vcmp.gt.f32.partialorder %v606, 0.0
  %vm611 = vcmp.gt.f32.partialorder %v607, 0.0
  %vm612 = vcmp.gt.f32.partialorder %v608, 0.0
  %v613 = vmin.f32 %v605, 0.0
  %v614 = vmin.f32 %v606, 0.0
  %v615 = vmin.f32 %v607, 0.0
  %v616 = vmin.f32 %v608, 0.0
  %v617 = vmul.f32 %v613, 1.442695
  %v618 = vpow.pop %v617
  %v619 = vmul.f32 %v614, 1.442695
  %v620 = vpow.pop %v619
  %v621 = vmul.f32 %v615, 1.442695
  %v622 = vpow.pop %v621
  %v623 = vmul.f32 %v616, 1.442695
  %v624 = vpow.pop %v623
  %v625 = vsub.f32 %v618, 1.0
  %v626 = vsub.f32 %v620, 1.0
  %v627 = vsub.f32 %v622, 1.0
  %v628 = vsub.f32 %v624, 1.0
  %v629 = vsel %vm609, %v605, %v625
  %v630 = vsel %vm610, %v606, %v626
  %v631 = vsel %vm611, %v607, %v627
  %v632 = vsel %vm612, %v608, %v628
  %v633 = vpack.c.bf16 %v630, %v629
  %v634 = vpack.c.bf16 %v632, %v631
  %s635 = scalar_lea.vmem %s4, 64
  %v636 = vld [vmem:[%s635] sm:$0xf]
  %v637 = vld [vmem:[%s635 + $0x4] sm:$0xf]
  %v638 = vld [vmem:[%s635 + $0x8] sm:$0xf]
  %v639 = vld [vmem:[%s635 + $0xc] sm:$0xf]
  %v640 = vld [vmem:[%s635 + $0x10] sm:$0xf]
  %v641 = vld [vmem:[%s635 + $0x14] sm:$0xf]
  %v642 = vld [vmem:[%s635 + $0x18] sm:$0xf]
  %v643 = vld [vmem:[%s635 + $0x1c] sm:$0xf]
  %v644 = vld [vmem:[%s635 + $0x20] sm:$0xf]
  %v645 = vld [vmem:[%s635 + $0x24] sm:$0xf]
  %v646 = vld [vmem:[%s635 + $0x28] sm:$0xf]
  %v647 = vld [vmem:[%s635 + $0x2c] sm:$0xf]
  %v648 = vld [vmem:[%s635 + $0x30] sm:$0xf]
  %v649 = vld [vmem:[%s635 + $0x34] sm:$0xf]
  %v650 = vld [vmem:[%s635 + $0x38] sm:$0xf]
  %v651 = vld [vmem:[%s635 + $0x3c] sm:$0xf]
  %v668 = vunpack.c.l.b16 %v636
  %v669 = vunpack.c.l.b16 %v637
  %v670 = vunpack.c.l.b16 %v638
  %v671 = vunpack.c.l.b16 %v639
  %v672 = vunpack.c.l.b16 %v640
  %v673 = vunpack.c.l.b16 %v641
  %v674 = vunpack.c.l.b16 %v642
  %v675 = vunpack.c.l.b16 %v643
  %v676 = vunpack.c.l.b16 %v644
  %v677 = vunpack.c.l.b16 %v645
  %v678 = vunpack.c.l.b16 %v646
  %v679 = vunpack.c.l.b16 %v647
  %v680 = vunpack.c.l.b16 %v648
  %v681 = vunpack.c.l.b16 %v649
  %v682 = vunpack.c.l.b16 %v650
  %v683 = vunpack.c.l.b16 %v651
  %v684 = vpack.c.b16 %v669, %v668
  %v685 = vpack.c.b16 %v671, %v670
  %v686 = vpack.c.b16 %v673, %v672
  %v687 = vpack.c.b16 %v675, %v674
  %v688 = vpack.c.b16 %v677, %v676
  %v689 = vpack.c.b16 %v679, %v678
  %v690 = vpack.c.b16 %v681, %v680
  %v691 = vpack.c.b16 %v683, %v682
  %700 = vmatprep.subr.bf16.mxu0 0
  %701 = vmatpush1.bf16.msra.mxu0 %v684
  %702 = vmatprep.subr.bf16.mxu0 0
  %703 = vmatpush1.bf16.msra.mxu0 %v685
  %704 = vmatprep.subr.bf16.mxu0 0
  %705 = vmatpush1.bf16.msra.mxu0 %v686
  %706 = vmatprep.subr.bf16.mxu0 0
  %707 = vmatpush1.bf16.msra.mxu0 %v687
  %708 = vmatprep.subr.bf16.mxu0 0
  %709 = vmatpush1.bf16.msra.mxu0 %v688
  %710 = vmatprep.subr.bf16.mxu0 0
  %711 = vmatpush1.bf16.msra.mxu0 %v689
  %712 = vmatprep.subr.bf16.mxu0 0
  %713 = vmatpush1.bf16.msra.mxu0 %v690
  %714 = vmatprep.subr.bf16.mxu0 0
  %715 = vmatpush1.bf16.msra.mxu0 %v691
  %716 = vmatprep.subr.bf16.mxu0 0
  %717 = vmatpush1.bf16.msra.mxu0 0
  %718 = vmatprep.subr.bf16.mxu0 0
  %719 = vmatpush1.bf16.msra.mxu0 0
  %720 = vmatprep.subr.bf16.mxu0 0
  %721 = vmatpush1.bf16.msra.mxu0 0
  %722 = vmatprep.subr.bf16.mxu0 0
  %723 = vmatpush1.bf16.msra.mxu0 0
  %724 = vmatprep.subr.bf16.mxu0 0
  %725 = vmatpush1.bf16.msra.mxu0 0
  %726 = vmatprep.subr.bf16.mxu0 0
  %727 = vmatpush1.bf16.msra.mxu0 0
  %728 = vmatprep.subr.bf16.mxu0 0
  %729 = vmatpush1.bf16.msra.mxu0 0
  %730 = vmatprep.subr.bf16.mxu0 0
  %731 = vmatpush1.bf16.msra.mxu0 0
  %732 = vmatprep.mubr.bf16.mxu0 0
  %733 = vmatmul.mubr.bf16.gmra.mrb[0].mxu0 %v633
  %v734 = vpop.f32.mrb[0].mxu0
  %v735 = vadd.f32 0.0, %v734
  %v736 = vpop.f32.mrb[0].mxu0
  %v737 = vpop.f32.mrb[0].mxu0
  %v738 = vadd.f32 0.0, %v737
  %v739 = vpop.f32.mrb[0].mxu0
  %740 = vmatprep.mubr.bf16.mxu0 0
  %741 = vmatmul.mubr.bf16.gmra.mrb[0].mxu0 %v634
  %v742 = vpop.f32.mrb[0].mxu0
  %v743 = vadd.f32 0.0, %v742
  %v744 = vpop.f32.mrb[0].mxu0
  %v745 = vpop.f32.mrb[0].mxu0
  %v746 = vadd.f32 0.0, %v745
  %v747 = vpop.f32.mrb[0].mxu0
  %748 = vdwg.mxu0
  %vm749 = vcmp.gt.f32.partialorder %v735, 0.0
  %vm750 = vcmp.gt.f32.partialorder %v738, 0.0
  %vm751 = vcmp.gt.f32.partialorder %v743, 0.0
  %vm752 = vcmp.gt.f32.partialorder %v746, 0.0
  %v753 = vmin.f32 %v735, 0.0
  %v754 = vmin.f32 %v738, 0.0
  %v755 = vmin.f32 %v743, 0.0
  %v756 = vmin.f32 %v746, 0.0
  %v757 = vmul.f32 %v753, 1.442695
  %v758 = vpow.pop %v757
  %v759 = vmul.f32 %v754, 1.442695
  %v760 = vpow.pop %v759
  %v761 = vmul.f32 %v755, 1.442695
  %v762 = vpow.pop %v761
  %v763 = vmul.f32 %v756, 1.442695
  %v764 = vpow.pop %v763
  %v765 = vsub.f32 %v758, 1.0
  %v766 = vsub.f32 %v760, 1.0
  %v767 = vsub.f32 %v762, 1.0
  %v768 = vsub.f32 %v764, 1.0
  %v769 = vsel %vm749, %v735, %v765
  %v770 = vsel %vm750, %v738, %v766
  %v771 = vsel %vm751, %v743, %v767
  %v772 = vsel %vm752, %v746, %v768
  %773 = vst [vmem:[#allocation2 + $0x8] sm:$0xff] %v769
  %774 = vst [vmem:[#allocation2 + $0x10] sm:$0xff] %v770
  %775 = vst [vmem:[#allocation2 + $0x28] sm:$0xff] %v771
  %776 = vst [vmem:[#allocation2 + $0x30] sm:$0xff] %v772
  %v777 = vld [vmem:[#allocation2 + $0x7] sm:$0xff]
  %v778 = vld [vmem:[#allocation2 + $0xf] sm:$0xff]
  %v779 = vld [vmem:[#allocation2 + $0x27] sm:$0xff]
  %v780 = vld [vmem:[#allocation2 + $0x2f] sm:$0xff]
  %v781 = vld [vmem:[#allocation2 + $0x8] sm:$0xff]
  %v782 = vld [vmem:[#allocation2 + $0x10] sm:$0xff]
  %v783 = vld [vmem:[#allocation2 + $0x28] sm:$0xff]
  %v784 = vld [vmem:[#allocation2 + $0x30] sm:$0xff]
  %v785 = vld [vmem:[#allocation2 + $0x9] sm:$0xff]
  %v786 = vld [vmem:[#allocation2 + $0x11] sm:$0xff]
  %v787 = vld [vmem:[#allocation2 + $0x29] sm:$0xff]
  %v788 = vld [vmem:[#allocation2 + $0x31] sm:$0xff]
  %v789 = vld [vmem:[%s3 + $0x12] sm:$0x1]
  %v790 = vlaneseq
  %v791 = vshrl.u32 %v790, 7
  %v792 = vsub.s32 0, %v791
  %v793 = vrot.slane %v789, %v792
  %v794 = vmul.f32 %v777, %v793
  %v795 = vmul.f32 %v778, %v793
  %v796 = vmul.f32 %v779, %v793
  %v797 = vmul.f32 %v780, %v793
  %v798 = vld [vmem:[%s3 + $0x15] sm:$0x1]
  %v799 = vlaneseq
  %v800 = vshrl.u32 %v799, 7
  %v801 = vsub.s32 0, %v800
  %v802 = vrot.slane %v798, %v801
  %v803 = vmul.f32 %v781, %v802
  %v804 = vmul.f32 %v782, %v802
  %v805 = vmul.f32 %v783, %v802
  %v806 = vmul.f32 %v784, %v802
  %v807 = vadd.f32 %v794, %v803
  %v808 = vadd.f32 %v795, %v804
  %v809 = vadd.f32 %v796, %v805
  %v810 = vadd.f32 %v797, %v806
  %v811 = vld [vmem:[%s3 + $0x18] sm:$0x1]
  %v812 = vlaneseq
  %v813 = vshrl.u32 %v812, 7
  %v814 = vsub.s32 0, %v813
  %v815 = vrot.slane %v811, %v814
  %v816 = vmul.f32 %v785, %v815
  %v817 = vmul.f32 %v786, %v815
  %v818 = vmul.f32 %v787, %v815
  %v819 = vmul.f32 %v788, %v815
  %v820 = vadd.f32 %v807, %v816
  %v821 = vadd.f32 %v808, %v817
  %v822 = vadd.f32 %v809, %v818
  %v823 = vadd.f32 %v810, %v819
  %v824 = vld [vmem:[%s3 + $0x13] sm:$0x1]
  %v825 = vlaneseq
  %v826 = vshrl.u32 %v825, 7
  %v827 = vsub.s32 0, %v826
  %v828 = vrot.slane %v824, %v827
  %v829 = vmul.f32 %v777, %v828
  %v830 = vmul.f32 %v778, %v828
  %v831 = vmul.f32 %v779, %v828
  %v832 = vmul.f32 %v780, %v828
  %v833 = vld [vmem:[%s3 + $0x16] sm:$0x1]
  %v834 = vlaneseq
  %v835 = vshrl.u32 %v834, 7
  %v836 = vsub.s32 0, %v835
  %v837 = vrot.slane %v833, %v836
  %v838 = vmul.f32 %v781, %v837
  %v839 = vmul.f32 %v782, %v837
  %v840 = vmul.f32 %v783, %v837
  %v841 = vmul.f32 %v784, %v837
  %v842 = vadd.f32 %v829, %v838
  %v843 = vadd.f32 %v830, %v839
  %v844 = vadd.f32 %v831, %v840
  %v845 = vadd.f32 %v832, %v841
  %v846 = vld [vmem:[%s3 + $0x19] sm:$0x1]
  %v847 = vlaneseq
  %v848 = vshrl.u32 %v847, 7
  %v849 = vsub.s32 0, %v848
  %v850 = vrot.slane %v846, %v849
  %v851 = vmul.f32 %v785, %v850
  %v852 = vmul.f32 %v786, %v850
  %v853 = vmul.f32 %v787, %v850
  %v854 = vmul.f32 %v788, %v850
  %v855 = vadd.f32 %v842, %v851
  %v856 = vadd.f32 %v843, %v852
  %v857 = vadd.f32 %v844, %v853
  %v858 = vadd.f32 %v845, %v854
  %v859 = vld [vmem:[%s3 + $0x14] sm:$0x1]
  %v860 = vlaneseq
  %v861 = vshrl.u32 %v860, 7
  %v862 = vsub.s32 0, %v861
  %v863 = vrot.slane %v859, %v862
  %v864 = vmul.f32 %v777, %v863
  %v865 = vmul.f32 %v778, %v863
  %v866 = vmul.f32 %v779, %v863
  %v867 = vmul.f32 %v780, %v863
  %v868 = vld [vmem:[%s3 + $0x17] sm:$0x1]
  %v869 = vlaneseq
  %v870 = vshrl.u32 %v869, 7
  %v871 = vsub.s32 0, %v870
  %v872 = vrot.slane %v868, %v871
  %v873 = vmul.f32 %v781, %v872
  %v874 = vmul.f32 %v782, %v872
  %v875 = vmul.f32 %v783, %v872
  %v876 = vmul.f32 %v784, %v872
  %v877 = vadd.f32 %v864, %v873
  %v878 = vadd.f32 %v865, %v874
  %v879 = vadd.f32 %v866, %v875
  %v880 = vadd.f32 %v867, %v876
  %v881 = vld [vmem:[%s3 + $0x1a] sm:$0x1]
  %v882 = vlaneseq
  %v883 = vshrl.u32 %v882, 7
  %v884 = vsub.s32 0, %v883
  %v885 = vrot.slane %v881, %v884
  %v886 = vmul.f32 %v785, %v885
  %v887 = vmul.f32 %v786, %v885
  %v888 = vmul.f32 %v787, %v885
  %v889 = vmul.f32 %v788, %v885
  %v890 = vadd.f32 %v877, %v886
  %v891 = vadd.f32 %v878, %v887
  %v892 = vadd.f32 %v879, %v888
  %v893 = vadd.f32 %v880, %v889
  %894 = vrot.lane.b32.xlu0 %v820, 8
  %v895 = vpop.permute.xlu0 %894
  %896 = vrot.lane.b32.xlu0 %v821, 8
  %v897 = vpop.permute.xlu0 %896
  %898 = vrot.lane.b32.xlu0 %v822, 8
  %v899 = vpop.permute.xlu0 %898
  %900 = vrot.lane.b32.xlu0 %v823, 8
  %v901 = vpop.permute.xlu0 %900
  %v902 = vsel %vm29, %v895, 0.0
  %v903 = vsel %vm29, %v897, 0.0
  %v904 = vsel %vm29, %v899, 0.0
  %v905 = vsel %vm29, %v901, 0.0
  %v906 = vadd.f32 %v855, %v902
  %v907 = vadd.f32 %v856, %v903
  %v908 = vadd.f32 %v857, %v904
  %v909 = vadd.f32 %v858, %v905
  %910 = vrot.lane.b32.xlu0 %v890, 120
  %v911 = vpop.permute.xlu0 %910
  %912 = vrot.lane.b32.xlu0 %v891, 120
  %v913 = vpop.permute.xlu0 %912
  %914 = vrot.lane.b32.xlu0 %v892, 120
  %v915 = vpop.permute.xlu0 %914
  %916 = vrot.lane.b32.xlu0 %v893, 120
  %v917 = vpop.permute.xlu0 %916
  %v918 = vsel %vm30, %v911, 0.0
  %v919 = vsel %vm30, %v913, 0.0
  %v920 = vsel %vm30, %v915, 0.0
  %v921 = vsel %vm30, %v917, 0.0
  %v922 = vadd.f32 %v906, %v918
  %v923 = vadd.f32 %v907, %v919
  %v924 = vadd.f32 %v908, %v920
  %v925 = vadd.f32 %v909, %v921
  %vm926 = vcmp.gt.f32.partialorder %v922, 0.0
  %vm927 = vcmp.gt.f32.partialorder %v923, 0.0
  %vm928 = vcmp.gt.f32.partialorder %v924, 0.0
  %vm929 = vcmp.gt.f32.partialorder %v925, 0.0
  %v930 = vmin.f32 %v922, 0.0
  %v931 = vmin.f32 %v923, 0.0
  %v932 = vmin.f32 %v924, 0.0
  %v933 = vmin.f32 %v925, 0.0
  %v934 = vmul.f32 %v930, 1.442695
  %v935 = vpow.pop %v934
  %v936 = vmul.f32 %v931, 1.442695
  %v937 = vpow.pop %v936
  %v938 = vmul.f32 %v932, 1.442695
  %v939 = vpow.pop %v938
  %v940 = vmul.f32 %v933, 1.442695
  %v941 = vpow.pop %v940
  %v942 = vsub.f32 %v935, 1.0
  %v943 = vsub.f32 %v937, 1.0
  %v944 = vsub.f32 %v939, 1.0
  %v945 = vsub.f32 %v941, 1.0
  %v946 = vsel %vm926, %v922, %v942
  %v947 = vsel %vm927, %v923, %v943
  %v948 = vsel %vm928, %v924, %v944
  %v949 = vsel %vm929, %v925, %v945
  %v950 = vpack.c.bf16 %v947, %v946
  %v951 = vpack.c.bf16 %v949, %v948
  %s952 = scalar_lea.vmem %s4, 128
  %v953 = vld [vmem:[%s952] sm:$0xf]
  %v954 = vld [vmem:[%s952 + $0x4] sm:$0xf]
  %v955 = vld [vmem:[%s952 + $0x8] sm:$0xf]
  %v956 = vld [vmem:[%s952 + $0xc] sm:$0xf]
  %v957 = vld [vmem:[%s952 + $0x10] sm:$0xf]
  %v958 = vld [vmem:[%s952 + $0x14] sm:$0xf]
  %v959 = vld [vmem:[%s952 + $0x18] sm:$0xf]
  %v960 = vld [vmem:[%s952 + $0x1c] sm:$0xf]
  %v961 = vld [vmem:[%s952 + $0x20] sm:$0xf]
  %v962 = vld [vmem:[%s952 + $0x24] sm:$0xf]
  %v963 = vld [vmem:[%s952 + $0x28] sm:$0xf]
  %v964 = vld [vmem:[%s952 + $0x2c] sm:$0xf]
  %v965 = vld [vmem:[%s952 + $0x30] sm:$0xf]
  %v966 = vld [vmem:[%s952 + $0x34] sm:$0xf]
  %v967 = vld [vmem:[%s952 + $0x38] sm:$0xf]
  %v968 = vld [vmem:[%s952 + $0x3c] sm:$0xf]
  %v985 = vunpack.c.l.b16 %v953
  %v986 = vunpack.c.l.b16 %v954
  %v987 = vunpack.c.l.b16 %v955
  %v988 = vunpack.c.l.b16 %v956
  %v989 = vunpack.c.l.b16 %v957
  %v990 = vunpack.c.l.b16 %v958
  %v991 = vunpack.c.l.b16 %v959
  %v992 = vunpack.c.l.b16 %v960
  %v993 = vunpack.c.l.b16 %v961
  %v994 = vunpack.c.l.b16 %v962
  %v995 = vunpack.c.l.b16 %v963
  %v996 = vunpack.c.l.b16 %v964
  %v997 = vunpack.c.l.b16 %v965
  %v998 = vunpack.c.l.b16 %v966
  %v999 = vunpack.c.l.b16 %v967
  %v1000 = vunpack.c.l.b16 %v968
  %v1001 = vpack.c.b16 %v986, %v985
  %v1002 = vpack.c.b16 %v988, %v987
  %v1003 = vpack.c.b16 %v990, %v989
  %v1004 = vpack.c.b16 %v992, %v991
  %v1005 = vpack.c.b16 %v994, %v993
  %v1006 = vpack.c.b16 %v996, %v995
  %v1007 = vpack.c.b16 %v998, %v997
  %v1008 = vpack.c.b16 %v1000, %v999
  %1017 = vmatprep.subr.bf16.mxu0 0
  %1018 = vmatpush1.bf16.msra.mxu0 %v1001
  %1019 = vmatprep.subr.bf16.mxu0 0
  %1020 = vmatpush1.bf16.msra.mxu0 %v1002
  %1021 = vmatprep.subr.bf16.mxu0 0
  %1022 = vmatpush1.bf16.msra.mxu0 %v1003
  %1023 = vmatprep.subr.bf16.mxu0 0
  %1024 = vmatpush1.bf16.msra.mxu0 %v1004
  %1025 = vmatprep.subr.bf16.mxu0 0
  %1026 = vmatpush1.bf16.msra.mxu0 %v1005
  %1027 = vmatprep.subr.bf16.mxu0 0
  %1028 = vmatpush1.bf16.msra.mxu0 %v1006
  %1029 = vmatprep.subr.bf16.mxu0 0
  %1030 = vmatpush1.bf16.msra.mxu0 %v1007
  %1031 = vmatprep.subr.bf16.mxu0 0
  %1032 = vmatpush1.bf16.msra.mxu0 %v1008
  %1033 = vmatprep.subr.bf16.mxu0 0
  %1034 = vmatpush1.bf16.msra.mxu0 0
  %1035 = vmatprep.subr.bf16.mxu0 0
  %1036 = vmatpush1.bf16.msra.mxu0 0
  %1037 = vmatprep.subr.bf16.mxu0 0
  %1038 = vmatpush1.bf16.msra.mxu0 0
  %1039 = vmatprep.subr.bf16.mxu0 0
  %1040 = vmatpush1.bf16.msra.mxu0 0
  %1041 = vmatprep.subr.bf16.mxu0 0
  %1042 = vmatpush1.bf16.msra.mxu0 0
  %1043 = vmatprep.subr.bf16.mxu0 0
  %1044 = vmatpush1.bf16.msra.mxu0 0
  %1045 = vmatprep.subr.bf16.mxu0 0
  %1046 = vmatpush1.bf16.msra.mxu0 0
  %1047 = vmatprep.subr.bf16.mxu0 0
  %1048 = vmatpush1.bf16.msra.mxu0 0
  %1049 = vmatprep.mubr.bf16.mxu0 0
  %1050 = vmatmul.mubr.bf16.gmra.mrb[0].mxu0 %v950
  %v1051 = vpop.f32.mrb[0].mxu0
  %v1052 = vadd.f32 0.0, %v1051
  %v1053 = vpop.f32.mrb[0].mxu0
  %v1054 = vpop.f32.mrb[0].mxu0
  %v1055 = vadd.f32 0.0, %v1054
  %v1056 = vpop.f32.mrb[0].mxu0
  %1057 = vmatprep.mubr.bf16.mxu0 0
  %1058 = vmatmul.mubr.bf16.gmra.mrb[0].mxu0 %v951
  %v1059 = vpop.f32.mrb[0].mxu0
  %v1060 = vadd.f32 0.0, %v1059
  %v1061 = vpop.f32.mrb[0].mxu0
  %v1062 = vpop.f32.mrb[0].mxu0
  %v1063 = vadd.f32 0.0, %v1062
  %v1064 = vpop.f32.mrb[0].mxu0
  %1065 = vdwg.mxu0
  %vm1066 = vcmp.gt.f32.partialorder %v1052, 0.0
  %vm1067 = vcmp.gt.f32.partialorder %v1055, 0.0
  %vm1068 = vcmp.gt.f32.partialorder %v1060, 0.0
  %vm1069 = vcmp.gt.f32.partialorder %v1063, 0.0
  %v1070 = vmin.f32 %v1052, 0.0
  %v1071 = vmin.f32 %v1055, 0.0
  %v1072 = vmin.f32 %v1060, 0.0
  %v1073 = vmin.f32 %v1063, 0.0
  %v1074 = vmul.f32 %v1070, 1.442695
  %v1075 = vpow.pop %v1074
  %v1076 = vmul.f32 %v1071, 1.442695
  %v1077 = vpow.pop %v1076
  %v1078 = vmul.f32 %v1072, 1.442695
  %v1079 = vpow.pop %v1078
  %v1080 = vmul.f32 %v1073, 1.442695
  %v1081 = vpow.pop %v1080
  %v1082 = vsub.f32 %v1075, 1.0
  %v1083 = vsub.f32 %v1077, 1.0
  %v1084 = vsub.f32 %v1079, 1.0
  %v1085 = vsub.f32 %v1081, 1.0
  %v1086 = vsel %vm1066, %v1052, %v1082
  %v1087 = vsel %vm1067, %v1055, %v1083
  %v1088 = vsel %vm1068, %v1060, %v1084
  %v1089 = vsel %vm1069, %v1063, %v1085
  %v1090 = vadd.f32 %v1086, %v132
  %v1091 = vadd.f32 %v1087, %v133
  %v1092 = vadd.f32 %v1088, %v134
  %v1093 = vadd.f32 %v1089, %v135
  %1094 = vst [vmem:[#allocation2 + $0x8] sm:$0xff] %v1090
  %1095 = vst [vmem:[#allocation2 + $0x10] sm:$0xff] %v1091
  %1096 = vst [vmem:[#allocation2 + $0x28] sm:$0xff] %v1092
  %1097 = vst [vmem:[#allocation2 + $0x30] sm:$0xff] %v1093
  %v1098 = vld [vmem:[#allocation2 + $0x7] sm:$0xff]
  %v1099 = vld [vmem:[#allocation2 + $0xf] sm:$0xff]
  %v1100 = vld [vmem:[#allocation2 + $0x27] sm:$0xff]
  %v1101 = vld [vmem:[#allocation2 + $0x2f] sm:$0xff]
  %v1102 = vld [vmem:[#allocation2 + $0x8] sm:$0xff]
  %v1103 = vld [vmem:[#allocation2 + $0x10] sm:$0xff]
  %v1104 = vld [vmem:[#allocation2 + $0x28] sm:$0xff]
  %v1105 = vld [vmem:[#allocation2 + $0x30] sm:$0xff]
  %v1106 = vld [vmem:[#allocation2 + $0x9] sm:$0xff]
  %v1107 = vld [vmem:[#allocation2 + $0x11] sm:$0xff]
  %v1108 = vld [vmem:[#allocation2 + $0x29] sm:$0xff]
  %v1109 = vld [vmem:[#allocation2 + $0x31] sm:$0xff]
  %v1110 = vpack.c.bf16 %v1099, %v1098
  %v1111 = vpack.c.bf16 %v1103, %v1102
  %v1112 = vpack.c.bf16 %v1107, %v1106
  %v1113 = vpack.c.bf16 %v1101, %v1100
  %v1114 = vpack.c.bf16 %v1105, %v1104
  %v1115 = vpack.c.bf16 %v1109, %v1108
  %v1116 = vld [vmem:[%s5] sm:$0xf]
  %v1117 = vld [vmem:[%s5 + $0x4] sm:$0xf]
  %v1118 = vld [vmem:[%s5 + $0x8] sm:$0xf]
  %v1119 = vld [vmem:[%s5 + $0xc] sm:$0xf]
  %v1120 = vld [vmem:[%s5 + $0x10] sm:$0xf]
  %v1121 = vld [vmem:[%s5 + $0x14] sm:$0xf]
  %v1122 = vld [vmem:[%s5 + $0x18] sm:$0xf]
  %v1123 = vld [vmem:[%s5 + $0x1c] sm:$0xf]
  %v1124 = vld [vmem:[%s5 + $0x20] sm:$0xf]
  %v1125 = vld [vmem:[%s5 + $0x24] sm:$0xf]
  %v1126 = vld [vmem:[%s5 + $0x28] sm:$0xf]
  %v1127 = vld [vmem:[%s5 + $0x2c] sm:$0xf]
  %v1128 = vld [vmem:[%s5 + $0x30] sm:$0xf]
  %v1129 = vld [vmem:[%s5 + $0x34] sm:$0xf]
  %v1130 = vld [vmem:[%s5 + $0x38] sm:$0xf]
  %v1131 = vld [vmem:[%s5 + $0x3c] sm:$0xf]
  %v1132 = vld [vmem:[%s5 + $0x40] sm:$0xf]
  %v1133 = vld [vmem:[%s5 + $0x44] sm:$0xf]
  %v1134 = vld [vmem:[%s5 + $0x48] sm:$0xf]
  %v1135 = vld [vmem:[%s5 + $0x4c] sm:$0xf]
  %v1136 = vld [vmem:[%s5 + $0x50] sm:$0xf]
  %v1137 = vld [vmem:[%s5 + $0x54] sm:$0xf]
  %v1138 = vld [vmem:[%s5 + $0x58] sm:$0xf]
  %v1139 = vld [vmem:[%s5 + $0x5c] sm:$0xf]
  %v1140 = vld [vmem:[%s5 + $0x60] sm:$0xf]
  %v1141 = vld [vmem:[%s5 + $0x64] sm:$0xf]
  %v1142 = vld [vmem:[%s5 + $0x68] sm:$0xf]
  %v1143 = vld [vmem:[%s5 + $0x6c] sm:$0xf]
  %v1144 = vld [vmem:[%s5 + $0x70] sm:$0xf]
  %v1145 = vld [vmem:[%s5 + $0x74] sm:$0xf]
  %v1146 = vld [vmem:[%s5 + $0x78] sm:$0xf]
  %v1147 = vld [vmem:[%s5 + $0x7c] sm:$0xf]
  %v1148 = vld [vmem:[%s5 + $0x80] sm:$0xf]
  %v1149 = vld [vmem:[%s5 + $0x84] sm:$0xf]
  %v1150 = vld [vmem:[%s5 + $0x88] sm:$0xf]
  %v1151 = vld [vmem:[%s5 + $0x8c] sm:$0xf]
  %v1152 = vld [vmem:[%s5 + $0x90] sm:$0xf]
  %v1153 = vld [vmem:[%s5 + $0x94] sm:$0xf]
  %v1154 = vld [vmem:[%s5 + $0x98] sm:$0xf]
  %v1155 = vld [vmem:[%s5 + $0x9c] sm:$0xf]
  %v1156 = vld [vmem:[%s5 + $0xa0] sm:$0xf]
  %v1157 = vld [vmem:[%s5 + $0xa4] sm:$0xf]
  %v1158 = vld [vmem:[%s5 + $0xa8] sm:$0xf]
  %v1159 = vld [vmem:[%s5 + $0xac] sm:$0xf]
  %v1160 = vld [vmem:[%s5 + $0xb0] sm:$0xf]
  %v1161 = vld [vmem:[%s5 + $0xb4] sm:$0xf]
  %v1162 = vld [vmem:[%s5 + $0xb8] sm:$0xf]
  %v1163 = vld [vmem:[%s5 + $0xbc] sm:$0xf]
  %v1164 = vld [vmem:[%s6] sm:$0x1]
  %v1166 = vlaneseq
  %v1167 = vshrl.u32 %v1166, 7
  %v1168 = vsub.s32 0, %v1167
  %v1169 = vrot.slane %v1164, %v1168
  %v1219 = vunpack.c.l.b16 %v1116
  %v1220 = vunpack.c.l.b16 %v1117
  %v1221 = vunpack.c.l.b16 %v1118
  %v1222 = vunpack.c.l.b16 %v1119
  %v1223 = vunpack.c.l.b16 %v1120
  %v1224 = vunpack.c.l.b16 %v1121
  %v1225 = vunpack.c.l.b16 %v1122
  %v1226 = vunpack.c.l.b16 %v1123
  %v1227 = vunpack.c.l.b16 %v1124
  %v1228 = vunpack.c.l.b16 %v1125
  %v1229 = vunpack.c.l.b16 %v1126
  %v1230 = vunpack.c.l.b16 %v1127
  %v1231 = vunpack.c.l.b16 %v1128
  %v1232 = vunpack.c.l.b16 %v1129
  %v1233 = vunpack.c.l.b16 %v1130
  %v1234 = vunpack.c.l.b16 %v1131
  %v1235 = vunpack.c.l.b16 %v1132
  %v1236 = vunpack.c.l.b16 %v1133
  %v1237 = vunpack.c.l.b16 %v1134
  %v1238 = vunpack.c.l.b16 %v1135
  %v1239 = vunpack.c.l.b16 %v1136
  %v1240 = vunpack.c.l.b16 %v1137
  %v1241 = vunpack.c.l.b16 %v1138
  %v1242 = vunpack.c.l.b16 %v1139
  %v1243 = vunpack.c.l.b16 %v1140
  %v1244 = vunpack.c.l.b16 %v1141
  %v1245 = vunpack.c.l.b16 %v1142
  %v1246 = vunpack.c.l.b16 %v1143
  %v1247 = vunpack.c.l.b16 %v1144
  %v1248 = vunpack.c.l.b16 %v1145
  %v1249 = vunpack.c.l.b16 %v1146
  %v1250 = vunpack.c.l.b16 %v1147
  %v1251 = vunpack.c.l.b16 %v1148
  %v1252 = vunpack.c.l.b16 %v1149
  %v1253 = vunpack.c.l.b16 %v1150
  %v1254 = vunpack.c.l.b16 %v1151
  %v1255 = vunpack.c.l.b16 %v1152
  %v1256 = vunpack.c.l.b16 %v1153
  %v1257 = vunpack.c.l.b16 %v1154
  %v1258 = vunpack.c.l.b16 %v1155
  %v1259 = vunpack.c.l.b16 %v1156
  %v1260 = vunpack.c.l.b16 %v1157
  %v1261 = vunpack.c.l.b16 %v1158
  %v1262 = vunpack.c.l.b16 %v1159
  %v1263 = vunpack.c.l.b16 %v1160
  %v1264 = vunpack.c.l.b16 %v1161
  %v1265 = vunpack.c.l.b16 %v1162
  %v1266 = vunpack.c.l.b16 %v1163
  %v1267 = vpack.c.b16 %v1220, %v1219
  %v1268 = vpack.c.b16 %v1222, %v1221
  %v1269 = vpack.c.b16 %v1224, %v1223
  %v1270 = vpack.c.b16 %v1226, %v1225
  %v1271 = vpack.c.b16 %v1228, %v1227
  %v1272 = vpack.c.b16 %v1230, %v1229
  %v1273 = vpack.c.b16 %v1232, %v1231
  %v1274 = vpack.c.b16 %v1234, %v1233
  %v1275 = vpack.c.b16 %v1236, %v1235
  %v1276 = vpack.c.b16 %v1238, %v1237
  %v1277 = vpack.c.b16 %v1240, %v1239
  %v1278 = vpack.c.b16 %v1242, %v1241
  %v1279 = vpack.c.b16 %v1244, %v1243
  %v1280 = vpack.c.b16 %v1246, %v1245
  %v1281 = vpack.c.b16 %v1248, %v1247
  %v1282 = vpack.c.b16 %v1250, %v1249
  %v1283 = vpack.c.b16 %v1252, %v1251
  %v1284 = vpack.c.b16 %v1254, %v1253
  %v1285 = vpack.c.b16 %v1256, %v1255
  %v1286 = vpack.c.b16 %v1258, %v1257
  %v1287 = vpack.c.b16 %v1260, %v1259
  %v1288 = vpack.c.b16 %v1262, %v1261
  %v1289 = vpack.c.b16 %v1264, %v1263
  %v1290 = vpack.c.b16 %v1266, %v1265
  %1315 = vmatprep.subr.bf16.mxu0 0
  %1316 = vmatpush1.bf16.msra.mxu0 %v1267
  %1317 = vmatprep.subr.bf16.mxu0 0
  %1318 = vmatpush1.bf16.msra.mxu0 %v1268
  %1319 = vmatprep.subr.bf16.mxu0 0
  %1320 = vmatpush1.bf16.msra.mxu0 %v1269
  %1321 = vmatprep.subr.bf16.mxu0 0
  %1322 = vmatpush1.bf16.msra.mxu0 %v1270
  %1323 = vmatprep.subr.bf16.mxu0 0
  %1324 = vmatpush1.bf16.msra.mxu0 %v1271
  %1325 = vmatprep.subr.bf16.mxu0 0
  %1326 = vmatpush1.bf16.msra.mxu0 %v1272
  %1327 = vmatprep.subr.bf16.mxu0 0
  %1328 = vmatpush1.bf16.msra.mxu0 %v1273
  %1329 = vmatprep.subr.bf16.mxu0 0
  %1330 = vmatpush1.bf16.msra.mxu0 %v1274
  %1331 = vmatprep.subr.bf16.mxu0 0
  %1332 = vmatpush1.bf16.msra.mxu0 %v1275
  %1333 = vmatprep.subr.bf16.mxu0 0
  %1334 = vmatpush1.bf16.msra.mxu0 %v1276
  %1335 = vmatprep.subr.bf16.mxu0 0
  %1336 = vmatpush1.bf16.msra.mxu0 %v1277
  %1337 = vmatprep.subr.bf16.mxu0 0
  %1338 = vmatpush1.bf16.msra.mxu0 %v1278
  %1339 = vmatprep.subr.bf16.mxu0 0
  %1340 = vmatpush1.bf16.msra.mxu0 %v1279
  %1341 = vmatprep.subr.bf16.mxu0 0
  %1342 = vmatpush1.bf16.msra.mxu0 %v1280
  %1343 = vmatprep.subr.bf16.mxu0 0
  %1344 = vmatpush1.bf16.msra.mxu0 %v1281
  %1345 = vmatprep.subr.bf16.mxu0 0
  %1346 = vmatpush1.bf16.msra.mxu0 %v1282
  %1347 = vmatprep.mubr.bf16.mxu0 %v1111
  %1348 = vmatmul.mubr.bf16.gmra.mrb[0].mxu0 %v1110
  %v1349 = vpop.f32.mrb[0].mxu0
  %v1350 = vadd.f32 %v1169, %v1349
  %v1351 = vpop.f32.mrb[0].mxu0
  %v1352 = vpop.f32.mrb[0].mxu0
  %v1353 = vadd.f32 %v1169, %v1352
  %v1354 = vpop.f32.mrb[0].mxu0
  %1355 = vmatprep.mubr.bf16.mxu0 %v1114
  %1356 = vmatmul.mubr.bf16.gmra.mrb[0].mxu0 %v1113
  %v1357 = vpop.f32.mrb[0].mxu0
  %v1358 = vadd.f32 %v1169, %v1357
  %v1359 = vpop.f32.mrb[0].mxu0
  %v1360 = vpop.f32.mrb[0].mxu0
  %v1361 = vadd.f32 %v1169, %v1360
  %v1362 = vpop.f32.mrb[0].mxu0
  %1363 = vdwg.mxu0
  %1364 = vmatprep.subr.bf16.mxu0 0
  %1365 = vmatpush1.bf16.msra.mxu0 %v1283
  %1366 = vmatprep.subr.bf16.mxu0 0
  %1367 = vmatpush1.bf16.msra.mxu0 %v1284
  %1368 = vmatprep.subr.bf16.mxu0 0
  %1369 = vmatpush1.bf16.msra.mxu0 %v1285
  %1370 = vmatprep.subr.bf16.mxu0 0
  %1371 = vmatpush1.bf16.msra.mxu0 %v1286
  %1372 = vmatprep.subr.bf16.mxu0 0
  %1373 = vmatpush1.bf16.msra.mxu0 %v1287
  %1374 = vmatprep.subr.bf16.mxu0 0
  %1375 = vmatpush1.bf16.msra.mxu0 %v1288
  %1376 = vmatprep.subr.bf16.mxu0 0
  %1377 = vmatpush1.bf16.msra.mxu0 %v1289
  %1378 = vmatprep.subr.bf16.mxu0 0
  %1379 = vmatpush1.bf16.msra.mxu0 %v1290
  %1380 = vmatprep.subr.bf16.mxu0 0
  %1381 = vmatpush1.bf16.msra.mxu0 0
  %1382 = vmatprep.subr.bf16.mxu0 0
  %1383 = vmatpush1.bf16.msra.mxu0 0
  %1384 = vmatprep.subr.bf16.mxu0 0
  %1385 = vmatpush1.bf16.msra.mxu0 0
  %1386 = vmatprep.subr.bf16.mxu0 0
  %1387 = vmatpush1.bf16.msra.mxu0 0
  %1388 = vmatprep.subr.bf16.mxu0 0
  %1389 = vmatpush1.bf16.msra.mxu0 0
  %1390 = vmatprep.subr.bf16.mxu0 0
  %1391 = vmatpush1.bf16.msra.mxu0 0
  %1392 = vmatprep.subr.bf16.mxu0 0
  %1393 = vmatpush1.bf16.msra.mxu0 0
  %1394 = vmatprep.subr.bf16.mxu0 0
  %1395 = vmatpush1.bf16.msra.mxu0 0
  %1396 = vmatprep.mubr.bf16.mxu0 0
  %1397 = vmatmul.mubr.bf16.gmra.mrb[0].mxu0 %v1112
  %v1398 = vpop.f32.mrb[0].mxu0
  %v1399 = vadd.f32 %v1350, %v1398
  %v1400 = vpop.f32.mrb[0].mxu0
  %v1401 = vpop.f32.mrb[0].mxu0
  %v1402 = vadd.f32 %v1353, %v1401
  %v1403 = vpop.f32.mrb[0].mxu0
  %1404 = vmatprep.mubr.bf16.mxu0 0
  %1405 = vmatmul.mubr.bf16.gmra.mrb[0].mxu0 %v1115
  %v1406 = vpop.f32.mrb[0].mxu0
  %v1407 = vadd.f32 %v1358, %v1406
  %v1408 = vpop.f32.mrb[0].mxu0
  %v1409 = vpop.f32.mrb[0].mxu0
  %v1410 = vadd.f32 %v1361, %v1409
  %v1411 = vpop.f32.mrb[0].mxu0
  %1412 = vdwg.mxu0
  %v1413 = vmax.f32 %v1399, 0.0
  %v1414 = vmax.f32 %v1402, 0.0
  %v1415 = vmax.f32 %v1407, 0.0
  %v1416 = vmax.f32 %v1410, 0.0
  %1417 = vst [vmem:[%s7] sm:$0xff] %v1413
  %1418 = vst [vmem:[%s7 + $0x8] sm:$0xff] %v1414
  %1419 = vst [vmem:[%s7 + $0x10] sm:$0xff] %v1415
  %1420 = vst [vmem:[%s7 + $0x18] sm:$0xff] %v1416
  // Predicated region
  $region30: #{cpm_forward.1} parent=0 // pred_check
    _
  $region31: #{cpm_forward.1} parent=0 // pred_check_branch
    %1422 = sbr.rel (0) target = $region33
  $region32: #{cpm_forward.1} parent=0 // pred_region
    _
  $region33: #{cpm_forward.1} parent=0 // pred_fallthru
    _
  // Predicated region
  $region34: #{cpm_forward.1} parent=0 // pred_check
    _
  $region35: #{cpm_forward.1} parent=0 // pred_check_branch
    %1424 = sbr.rel (0) target = $region37
  $region36: #{cpm_forward.1} parent=0 // pred_region
    _
  $region37: #{cpm_forward.1} parent=0 // pred_fallthru
    _

</llo_original>
